<compile_context>
chip_gen: v6e
topology: v6e:2x2x1
jax: 0.10.0
libtpu: 0.0.40
codegen_flags: <defaults>
</compile_context>

<pallas_src>
import functools

import numpy as np
import jax
import jax.numpy as jnp
from jax import lax
from jax.experimental import pallas as pl
from jax.experimental.pallas import tpu as pltpu


def _round_up(x, m):
    return ((x + m - 1) // m) * m


# --------------------------------------------------------------------------
# Kernel 1: fused, bias-free Q|K|V projection   qkv = v @ [Wq | Wk | Wv]
# --------------------------------------------------------------------------
def _qkv_kernel(x_ref, w_ref, o_ref, *, cdt):
    o_ref[...] = jnp.dot(
        x_ref[...].astype(cdt), w_ref[...].astype(cdt),
        preferred_element_type=jnp.float32)


def fused_qkv_projection(x_pad, w_qkv, *, tile_m, cdt):
    m, kd = x_pad.shape
    n = w_qkv.shape[1]
    return pl.pallas_call(
        functools.partial(_qkv_kernel, cdt=cdt),
        out_shape=jax.ShapeDtypeStruct((m, n), jnp.float32),
        grid_spec=pltpu.PrefetchScalarGridSpec(
            num_scalar_prefetch=0,
            grid=(m // tile_m,),
            in_specs=[pl.BlockSpec((tile_m, kd), lambda i: (i, 0)),
                      pl.BlockSpec((kd, n), lambda i: (0, 0))],
            out_specs=pl.BlockSpec((tile_m, n), lambda i: (i, 0))),
        compiler_params=pltpu.CompilerParams(
            dimension_semantics=("parallel",),
            vmem_limit_bytes=32 * 1024 * 1024),
    )(x_pad, w_qkv)


# --------------------------------------------------------------------------
# Kernel 2: fused per-edge attention + destination-node segment sum.
#   proj_e  = e_tile @ We
#   score   = K_src * Q_dst / sqrt(d) * proj_e         -> e_out
#   s_rep   = exp(clip(per-head sum of score, -5, 5))  (replicated over head cols,
#                                                       via block-diag MXU matmul)
#   msg     = V_src * envelope * s_rep
#   wV,z    accumulate per destination node block (VMEM scratch accumulators);
#   v_out   = wV * reciprocal(z + 1e-6)   written at the last tile of each block.
# --------------------------------------------------------------------------
def _edge_attn_kernel(blk_ref, ksrc_ref, qdst_ref, vsrc_ref, e_ref, env_ref,
                      dst_ref, we_ref, hsum_ref, eout_ref, vout_ref,
                      wv_acc, z_acc, *, tile_n, inv_scale, cdt):
    t = pl.program_id(0)
    nt = pl.num_programs(0)
    blk_t = blk_ref[t]
    prev_blk = blk_ref[jnp.maximum(t - 1, 0)]
    next_blk = blk_ref[jnp.minimum(t + 1, nt - 1)]
    is_first = jnp.logical_or(t == 0, prev_blk != blk_t)
    is_last = jnp.logical_or(t == nt - 1, next_blk != blk_t)

    @pl.when(is_first)
    def _():
        wv_acc[...] = jnp.zeros_like(wv_acc)
        z_acc[...] = jnp.zeros_like(z_acc)

    # proj_e fused into the edge kernel (bias-free).
    pe = jnp.dot(e_ref[...].astype(cdt), we_ref[...].astype(cdt),
                 preferred_element_type=jnp.float32)

    score = (ksrc_ref[...] * qdst_ref[...]) * (pe * inv_scale)
    eout_ref[...] = score                                     # e_out (pre-exp)

    # Per-head sum replicated over that head's columns via a block-diagonal
    # [Cp, Cp] matmul -> fully lane-dense, no per-head slicing.
    ssum = jnp.dot(score.astype(cdt), hsum_ref[...].astype(cdt),
                   preferred_element_type=jnp.float32)
    s = jnp.exp(jnp.clip(ssum, -5.0, 5.0))                    # [TE, Cp]
    msg = vsrc_ref[...] * env_ref[...] * s                    # [TE, Cp]

    # In-register one-hot scatter matrix for this tile ([TE, TN], dummy edges
    # carry dst_local = -1 and contribute nothing).
    n_e = ksrc_ref.shape[0]
    oh = (lax.broadcasted_iota(jnp.int32, (n_e, tile_n), 1)
          == dst_ref[...]).astype(cdt)
    oh_t = oh.T                                               # [TN, TE]

    wv_acc[...] += jnp.dot(oh_t, msg.astype(cdt),
                           preferred_element_type=jnp.float32)
    z_acc[...] += jnp.dot(oh_t, s.astype(cdt),
                          preferred_element_type=jnp.float32)

    @pl.when(is_last)
    def _():
        vout_ref[...] = wv_acc[...] * pl.reciprocal(z_acc[...] + 1e-6,
                                                    approx=True)


# --------------------------------------------------------------------------
# Forward pass (wrapper: padding, edge sorting / block padding, gathers).
# --------------------------------------------------------------------------
@functools.partial(jax.jit, static_argnames=("num_heads", "out_dim", "tile_e",
                                             "tile_n", "mxu_dtype"))
def multi_head_attention(params, v, e, src, dst, envelope, *, num_heads,
                         out_dim, tile_e=128, tile_n=128,
                         mxu_dtype=jnp.float32):
    n_nodes, in_dim = v.shape
    n_edges = e.shape[0]
    h, d = num_heads, out_dim
    c = h * d
    cp = _round_up(c, 128)                 # lane-dense feature width
    din_p = _round_up(in_dim, 128)
    n_pad = _round_up(n_nodes, tile_n)
    nb = n_pad // tile_n                   # node blocks
    e_pad_len = _round_up(n_edges, tile_e) + nb * tile_e   # static upper bound
    n_tiles = e_pad_len // tile_e
    cdt = mxu_dtype

    # ---- pack / zero-pad weights (zero padding keeps the math exact) ----
    def pad2(w, r, cc):
        return jnp.zeros((r, cc), jnp.float32).at[:w.shape[0], :w.shape[1]].set(w)

    w_qkv = jnp.concatenate([pad2(params["Wq"], din_p, cp),
                             pad2(params["Wk"], din_p, cp),
                             pad2(params["Wv"], din_p, cp)], axis=1)
    w_e = pad2(params["We"], din_p, cp)

    # Block-diagonal "same head" matrix: ssum[:, c'] = sum over head(c') cols.
    col = np.arange(cp)
    hsum = ((col[:, None] // d == col[None, :] // d)
            & (col[:, None] < c) & (col[None, :] < c)).astype(np.float32)
    hsum = jnp.asarray(hsum)

    # ---- Kernel 1: fused Q|K|V projection over node tiles ----
    v_pad = jnp.zeros((n_pad, din_p), jnp.float32).at[:n_nodes, :in_dim].set(v)
    qkv = fused_qkv_projection(v_pad, w_qkv, tile_m=tile_n, cdt=cdt)
    q_n = qkv[:, :cp]
    k_n = qkv[:, cp:2 * cp]
    v_n = qkv[:, 2 * cp:3 * cp]

    # ---- sort edges by destination node block; pad each block to tile_e ----
    blk = dst // tile_n
    order = jnp.argsort(blk)
    sorted_blk = blk[order]
    counts = jnp.bincount(blk, length=nb)
    padded_counts = jnp.maximum(-(-counts // tile_e), 1) * tile_e
    starts = jnp.cumsum(padded_counts) - padded_counts          # exclusive
    csum = jnp.cumsum(counts) - counts                          # exclusive
    padded_pos = starts[sorted_blk] + (jnp.arange(n_edges) - csum[sorted_blk])
    edge_id = jnp.full((e_pad_len,), -1, jnp.int32).at[padded_pos].set(
        order.astype(jnp.int32))
    valid = edge_id >= 0
    edge_id_safe = jnp.where(valid, edge_id, 0)
    tile_blk = (jnp.searchsorted(starts // tile_e, jnp.arange(n_tiles),
                                 side="right") - 1).astype(jnp.int32)
    pos_of_edge = jnp.zeros((n_edges,), jnp.int32).at[order].set(
        padded_pos.astype(jnp.int32))

    # ---- gather per-edge operands into the padded, block-sorted order ----
    # TODO(synk): fuse this K/Q/V row gather into the edge kernel with a manual
    # DMA gather (currently an XLA take in HBM).
    src_p = src[edge_id_safe]
    dst_p = dst[edge_id_safe]
    k_src = k_n[src_p]
    q_dst = q_n[dst_p]
    v_src = v_n[src_p]
    e_feat = jnp.zeros((e_pad_len, din_p), jnp.float32).at[:, :in_dim].set(
        e[edge_id_safe])
    env_p = envelope[edge_id_safe].astype(jnp.float32).reshape(e_pad_len, 1)
    dst_loc = jnp.where(valid, dst_p % tile_n, -1).astype(jnp.int32).reshape(
        e_pad_len, 1)

    # ---- Kernel 2: fused edge attention + per-node-block segment sum ----
    kernel = functools.partial(_edge_attn_kernel, tile_n=tile_n,
                               inv_scale=float(1.0 / np.sqrt(d)), cdt=cdt)
    e_out_p, v_out_p = pl.pallas_call(
        kernel,
        out_shape=(jax.ShapeDtypeStruct((e_pad_len, cp), jnp.float32),
                   jax.ShapeDtypeStruct((n_pad, cp), jnp.float32)),
        grid_spec=pltpu.PrefetchScalarGridSpec(
            num_scalar_prefetch=1,
            grid=(n_tiles,),
            in_specs=[
                pl.BlockSpec((tile_e, cp), lambda t, tb: (t, 0)),      # K_src
                pl.BlockSpec((tile_e, cp), lambda t, tb: (t, 0)),      # Q_dst
                pl.BlockSpec((tile_e, cp), lambda t, tb: (t, 0)),      # V_src
                pl.BlockSpec((tile_e, din_p), lambda t, tb: (t, 0)),   # e feats
                pl.BlockSpec((tile_e, 1), lambda t, tb: (t, 0)),       # envelope
                pl.BlockSpec((tile_e, 1), lambda t, tb: (t, 0)),       # dst_local
                pl.BlockSpec((din_p, cp), lambda t, tb: (0, 0)),       # We
                pl.BlockSpec((cp, cp), lambda t, tb: (0, 0)),          # head-sum
            ],
            out_specs=(
                pl.BlockSpec((tile_e, cp), lambda t, tb: (t, 0)),      # e_out
                pl.BlockSpec((tile_n, cp), lambda t, tb: (tb[t], 0)),  # v_out
            ),
            scratch_shapes=[pltpu.VMEM((tile_n, cp), jnp.float32),     # wV acc
                            pltpu.VMEM((tile_n, cp), jnp.float32)]),   # z acc
        compiler_params=pltpu.CompilerParams(
            dimension_semantics=("arbitrary",),   # sequential segment accumulation
            vmem_limit_bytes=32 * 1024 * 1024),
    )(tile_blk, k_src, q_dst, v_src, e_feat, env_p, dst_loc, w_e, hsum)

    v_out = v_out_p[:n_nodes, :c].reshape(n_nodes, h, d)
    e_out = e_out_p[pos_of_edge, :c].reshape(n_edges, h, d)
    return v_out, e_out


# --------------------------------------------------------------------------
# Deterministic parameter init (PyTorch-Linear-style uniform, use_bias=False)
# --------------------------------------------------------------------------
def init_params(key, in_dim, out_dim, num_heads):
    c = out_dim * num_heads
    bound = 1.0 / np.sqrt(in_dim)
    ks = jax.random.split(key, 4)

    def mk(k):
        return jax.random.uniform(k, (in_dim, c), jnp.float32, -bound, bound)

    # TODO(synk): use_bias=True variant (add biases to the fused QKV / proj_e).
    return dict(Wq=mk(ks[0]), Wk=mk(ks[1]), Wv=mk(ks[2]), We=mk(ks[3]))


# --------------------------------------------------------------------------
# Pure-JAX reference (for the self-check)
# --------------------------------------------------------------------------
def reference_forward(params, v, e, src, dst, envelope, num_heads, out_dim):
    n, e_cnt = v.shape[0], e.shape[0]
    h, d = num_heads, out_dim
    q = (v @ params["Wq"]).reshape(n, h, d)
    k = (v @ params["Wk"]).reshape(n, h, d)
    vv = (v @ params["Wv"]).reshape(n, h, d)
    pe = (e @ params["We"]).reshape(e_cnt, h, d)

    score = k[src] * q[dst] / np.sqrt(d) * pe
    e_out = score
    s = jnp.exp(jnp.clip(score.sum(-1, keepdims=True), -5.0, 5.0))   # [E,H,1]
    msg = vv[src] * envelope[:, :, None] * s
    wv = jnp.zeros((n, h, d), jnp.float32).at[dst].add(msg)
    z = jnp.zeros((n, h, 1), jnp.float32).at[dst].add(s)
    v_out = wv / (z + 1e-6)
    return v_out, e_out


if __name__ == "__main__":
    in_dim = 48
    out_dim = 8          # per-head dim (module's self.out_dim)
    num_heads = 4
    n_nodes, n_edges = 160, 480   # spans 2 node blocks -> exercises segment logic

    key = jax.random.PRNGKey(0)
    k1, k2, k3, k4, k5, kp = jax.random.split(key, 6)
    v = jax.random.normal(k1, (n_nodes, in_dim), jnp.float32)
    e = jax.random.normal(k2, (n_edges, in_dim), jnp.float32)
    src = jax.random.randint(k3, (n_edges,), 0, n_nodes)
    dst = jax.random.randint(k4, (n_edges,), 0, n_nodes)
    envelope = jax.random.uniform(k5, (n_edges, 1), jnp.float32)

    params = init_params(kp, in_dim, out_dim, num_heads)

    v_out, e_out = multi_head_attention(params, v, e, src, dst, envelope,
                                        num_heads=num_heads, out_dim=out_dim)
    jax.block_until_ready((v_out, e_out))

    v_ref, e_ref = reference_forward(params, v, e, src, dst, envelope,
                                     num_heads, out_dim)
    np.testing.assert_allclose(np.asarray(e_out), np.asarray(e_ref),
                               rtol=3e-2, atol=3e-2)
    np.testing.assert_allclose(np.asarray(v_out), np.asarray(v_ref),
                               rtol=3e-2, atol=3e-2)

    print("KERNEL_OK")
</pallas_src>

<mosaic_0001>
module attributes {stable_mosaic.version = 11 : i64} {
  func.func private @main(%arg0: i32) attributes {dimension_semantics = [#tpu.dimension_semantics<core_parallel>], iteration_bounds = array<i64: 2>, tpu.core_type = #tpu.core_type<sc_scalar_subcore>, window_params = []} {
    return
  }
}

module attributes {stable_mosaic.version = 11 : i64} {
  func.func private @main(%arg0: i32) attributes {dimension_semantics = [#tpu.dimension_semantics<core_parallel>], iteration_bounds = array<i64: 2>, tpu.core_type = #tpu.core_type<sc_scalar_subcore>, window_params = []} {
    return
  }
}

module attributes {stable_mosaic.version = 11 : i64} {
  func.func @_qkv_kernel(%arg0: i32, %arg1: memref<128x128xf32, #tpu.memory_space<vmem>>, %arg2: memref<128x384xf32, #tpu.memory_space<vmem>>, %arg3: memref<128x384xf32, #tpu.memory_space<vmem>>) attributes {dimension_semantics = [#tpu.dimension_semantics<parallel>], iteration_bounds = array<i64: 2>, scalar_prefetch = 0 : i64, scratch_operands = 0 : i64, tpu.core_type = #tpu.core_type<tc>, window_params = [{transform_indices = @transform_0, window_bounds = array<i64: 128, 128>}, {pipeline_mode = #tpu.pipeline_mode<synchronous>, transform_indices = @transform_1, window_bounds = array<i64: 128, 384>}, {transform_indices = @transform_2, window_bounds = array<i64: 128, 384>}]} {
    %c0 = arith.constant 0 : index
    %c0_0 = arith.constant 0 : index
    %0 = vector.load %arg1[%c0, %c0_0] : memref<128x128xf32, #tpu.memory_space<vmem>>, vector<128x128xf32>
    %c0_1 = arith.constant 0 : index
    %c0_2 = arith.constant 0 : index
    %1 = vector.load %arg2[%c0_1, %c0_2] : memref<128x384xf32, #tpu.memory_space<vmem>>, vector<128x384xf32>
    %cst = arith.constant dense<0.000000e+00> : vector<128x384xf32>
    %2 = tpu.matmul %0, %1, %cst {dimension_numbers = #tpu.dot_dimension_numbers<[1], [0], [0], [1], [0, 0, 1, 1], [], []>} : vector<128x128xf32>, vector<128x384xf32>, vector<128x384xf32> -> vector<128x384xf32>
    %c0_3 = arith.constant 0 : index
    %c0_4 = arith.constant 0 : index
    %3 = vector.load %arg3[%c0_3, %c0_4] : memref<128x384xf32, #tpu.memory_space<vmem>>, vector<128x384xf32>
    tpu.vector_store %arg3[%c0_3, %c0_4], %2 {strides = array<i32>} : memref<128x384xf32, #tpu.memory_space<vmem>>, vector<128x384xf32>,
    return
  }
  func.func @transform_0(%arg0: i32) -> (i32, i32) {
    %c0_i32 = arith.constant 0 : i32
    %c0_i32_0 = arith.constant 0 : i32
    return %arg0, %c0_i32 : i32, i32
  }
  func.func @transform_1(%arg0: i32) -> (i32, i32) {
    %c0_i32 = arith.constant 0 : i32
    %c0_i32_0 = arith.constant 0 : i32
    %c0_i32_1 = arith.constant 0 : i32
    return %c0_i32, %c0_i32_0 : i32, i32
  }
  func.func @transform_2(%arg0: i32) -> (i32, i32) {
    %c0_i32 = arith.constant 0 : i32
    %c0_i32_0 = arith.constant 0 : i32
    return %arg0, %c0_i32 : i32, i32
  }
}

module attributes {stable_mosaic.version = 11 : i64} {
  func.func @_edge_attn_kernel(%arg0: i32, %arg1: memref<6xi32, #tpu.memory_space<smem>>, %arg2: memref<128x128xf32, #tpu.memory_space<vmem>>, %arg3: memref<128x128xf32, #tpu.memory_space<vmem>>, %arg4: memref<128x128xf32, #tpu.memory_space<vmem>>, %arg5: memref<128x128xf32, #tpu.memory_space<vmem>>, %arg6: memref<128x1xf32, #tpu.memory_space<vmem>>, %arg7: memref<128x1xi32, #tpu.memory_space<vmem>>, %arg8: memref<128x128xf32, #tpu.memory_space<vmem>>, %arg9: memref<128x128xf32, #tpu.memory_space<vmem>>, %arg10: memref<128x128xf32, #tpu.memory_space<vmem>>, %arg11: memref<128x128xf32, #tpu.memory_space<vmem>>, %arg12: memref<128x128xf32, #tpu.memory_space<vmem>>, %arg13: memref<128x128xf32, #tpu.memory_space<vmem>>) attributes {dimension_semantics = [#tpu.dimension_semantics<arbitrary>], iteration_bounds = array<i64: 6>, scalar_prefetch = 1 : i64, scratch_operands = 2 : i64, tpu.core_type = #tpu.core_type<tc>, window_params = [{transform_indices = @transform_0, window_bounds = array<i64: 128, 128>}, {transform_indices = @transform_1, window_bounds = array<i64: 128, 128>}, {transform_indices = @transform_2, window_bounds = array<i64: 128, 128>}, {transform_indices = @transform_3, window_bounds = array<i64: 128, 128>}, {transform_indices = @transform_4, window_bounds = array<i64: 128, 1>}, {transform_indices = @transform_5, window_bounds = array<i64: 128, 1>}, {pipeline_mode = #tpu.pipeline_mode<synchronous>, transform_indices = @transform_6, window_bounds = array<i64: 128, 128>}, {pipeline_mode = #tpu.pipeline_mode<synchronous>, transform_indices = @transform_7, window_bounds = array<i64: 128, 128>}, {transform_indices = @transform_8, window_bounds = array<i64: 128, 128>}, {transform_indices = @transform_9, window_bounds = array<i64: 128, 128>}]} {
    %0 = arith.index_cast %arg0 : i32 to index
    %1 = memref.load %arg1[%0] : memref<6xi32, #tpu.memory_space<smem>>
    %c1_i32 = arith.constant 1 : i32
    %2 = arith.subi %arg0, %c1_i32 : i32
    %c0_i32 = arith.constant 0 : i32
    %3 = arith.maxsi %2, %c0_i32 : i32
    %4 = arith.index_cast %3 : i32 to index
    %5 = memref.load %arg1[%4] : memref<6xi32, #tpu.memory_space<smem>>
    %c1_i32_0 = arith.constant 1 : i32
    %6 = arith.addi %arg0, %c1_i32_0 : i32
    %c5_i32 = arith.constant 5 : i32
    %7 = arith.minsi %6, %c5_i32 : i32
    %8 = arith.index_cast %7 : i32 to index
    %9 = memref.load %arg1[%8] : memref<6xi32, #tpu.memory_space<smem>>
    %c0_i32_1 = arith.constant 0 : i32
    %10 = arith.cmpi eq, %arg0, %c0_i32_1 : i32
    %11 = arith.cmpi ne, %5, %1 : i32
    %12 = arith.ori %10, %11 : i1
    %c5_i32_2 = arith.constant 5 : i32
    %13 = arith.cmpi eq, %arg0, %c5_i32_2 : i32
    %14 = arith.cmpi ne, %9, %1 : i32
    %15 = arith.ori %13, %14 : i1
    %16 = arith.extui %12 : i1 to i32
    %c0_i32_3 = arith.constant 0 : i32
    %17 = arith.cmpi ne, %16, %c0_i32_3 : i32
    scf.if %17 {
      %cst_36 = arith.constant 0.000000e+00 : f32
      %57 = vector.broadcast %cst_36 : f32 to vector<128x128xf32>
      %c0_37 = arith.constant 0 : index
      %c0_38 = arith.constant 0 : index
      %58 = vector.load %arg12[%c0_37, %c0_38] : memref<128x128xf32, #tpu.memory_space<vmem>>, vector<128x128xf32>
      tpu.vector_store %arg12[%c0_37, %c0_38], %57 {strides = array<i32>} : memref<128x128xf32, #tpu.memory_space<vmem>>, vector<128x128xf32>,
      %cst_39 = arith.constant 0.000000e+00 : f32
      %59 = vector.broadcast %cst_39 : f32 to vector<128x128xf32>
      %c0_40 = arith.constant 0 : index
      %c0_41 = arith.constant 0 : index
      %60 = vector.load %arg13[%c0_40, %c0_41] : memref<128x128xf32, #tpu.memory_space<vmem>>, vector<128x128xf32>
      tpu.vector_store %arg13[%c0_40, %c0_41], %59 {strides = array<i32>} : memref<128x128xf32, #tpu.memory_space<vmem>>, vector<128x128xf32>,
    } else {
    }
    %c0 = arith.constant 0 : index
    %c0_4 = arith.constant 0 : index
    %18 = vector.load %arg5[%c0, %c0_4] : memref<128x128xf32, #tpu.memory_space<vmem>>, vector<128x128xf32>
    %c0_5 = arith.constant 0 : index
    %c0_6 = arith.constant 0 : index
    %19 = vector.load %arg8[%c0_5, %c0_6] : memref<128x128xf32, #tpu.memory_space<vmem>>, vector<128x128xf32>
    %cst = arith.constant dense<0.000000e+00> : vector<128x128xf32>
    %20 = tpu.matmul %18, %19, %cst {dimension_numbers = #tpu.dot_dimension_numbers<[1], [0], [0], [1], [0, 0, 1, 1], [], []>} : vector<128x128xf32>, vector<128x128xf32>, vector<128x128xf32> -> vector<128x128xf32>
    %c0_7 = arith.constant 0 : index
    %c0_8 = arith.constant 0 : index
    %21 = vector.load %arg2[%c0_7, %c0_8] : memref<128x128xf32, #tpu.memory_space<vmem>>, vector<128x128xf32>
    %c0_9 = arith.constant 0 : index
    %c0_10 = arith.constant 0 : index
    %22 = vector.load %arg3[%c0_9, %c0_10] : memref<128x128xf32, #tpu.memory_space<vmem>>, vector<128x128xf32>
    %23 = arith.mulf %21, %22 : vector<128x128xf32>
    %cst_11 = arith.constant 0.353553385 : f32
    %24 = vector.broadcast %cst_11 : f32 to vector<128x128xf32>
    %25 = arith.mulf %20, %24 : vector<128x128xf32>
    %26 = arith.mulf %23, %25 : vector<128x128xf32>
    %c0_12 = arith.constant 0 : index
    %c0_13 = arith.constant 0 : index
    %27 = vector.load %arg10[%c0_12, %c0_13] : memref<128x128xf32, #tpu.memory_space<vmem>>, vector<128x128xf32>
    tpu.vector_store %arg10[%c0_12, %c0_13], %26 {strides = array<i32>} : memref<128x128xf32, #tpu.memory_space<vmem>>, vector<128x128xf32>,
    %c0_14 = arith.constant 0 : index
    %c0_15 = arith.constant 0 : index
    %28 = vector.load %arg9[%c0_14, %c0_15] : memref<128x128xf32, #tpu.memory_space<vmem>>, vector<128x128xf32>
    %cst_16 = arith.constant dense<0.000000e+00> : vector<128x128xf32>
    %29 = tpu.matmul %26, %28, %cst_16 {dimension_numbers = #tpu.dot_dimension_numbers<[1], [0], [0], [1], [0, 0, 1, 1], [], []>} : vector<128x128xf32>, vector<128x128xf32>, vector<128x128xf32> -> vector<128x128xf32>
    %cst_17 = arith.constant -5.000000e+00 : f32
    %cst_18 = arith.constant 5.000000e+00 : f32
    %30 = vector.broadcast %cst_17 : f32 to vector<128x128xf32>
    %31 = arith.maximumf %30, %29 : vector<128x128xf32>
    %32 = vector.broadcast %cst_18 : f32 to vector<128x128xf32>
    %33 = arith.minimumf %32, %31 : vector<128x128xf32>
    %34 = math.exp %33 : vector<128x128xf32>
    %c0_19 = arith.constant 0 : index
    %c0_20 = arith.constant 0 : index
    %35 = vector.load %arg4[%c0_19, %c0_20] : memref<128x128xf32, #tpu.memory_space<vmem>>, vector<128x128xf32>
    %c0_21 = arith.constant 0 : index
    %c0_22 = arith.constant 0 : index
    %36 = vector.load %arg6[%c0_21, %c0_22] : memref<128x1xf32, #tpu.memory_space<vmem>>, vector<128x1xf32>
    %37 = vector.broadcast %36 : vector<128x1xf32> to vector<128x128xf32>
    %38 = arith.mulf %35, %37 : vector<128x128xf32>
    %39 = arith.mulf %38, %34 : vector<128x128xf32>
    %40 = tpu.iota {dimensions = array<i32: 1>} : vector<128x128xi32>
    %c0_23 = arith.constant 0 : index
    %c0_24 = arith.constant 0 : index
    %41 = vector.load %arg7[%c0_23, %c0_24] : memref<128x1xi32, #tpu.memory_space<vmem>>, vector<128x1xi32>
    %42 = vector.broadcast %41 : vector<128x1xi32> to vector<128x128xi32>
    %43 = arith.cmpi eq, %40, %42 : vector<128x128xi32>
    %44 = arith.extui %43 : vector<128x128xi1> to vector<128x128xi32>
    %45 = arith.sitofp %44 : vector<128x128xi32> to vector<128x128xf32>
    %46 = tpu.transpose %45, [1, 0] : vector<128x128xf32> -> vector<128x128xf32>
    %c0_25 = arith.constant 0 : index
    %c0_26 = arith.constant 0 : index
    %47 = vector.load %arg12[%c0_25, %c0_26] : memref<128x128xf32, #tpu.memory_space<vmem>>, vector<128x128xf32>
    %cst_27 = arith.constant dense<0.000000e+00> : vector<128x128xf32>
    %48 = tpu.matmul %46, %39, %cst_27 {dimension_numbers = #tpu.dot_dimension_numbers<[1], [0], [0], [1], [0, 0, 1, 1], [], []>} : vector<128x128xf32>, vector<128x128xf32>, vector<128x128xf32> -> vector<128x128xf32>
    %49 = arith.addf %47, %48 : vector<128x128xf32>
    %c0_28 = arith.constant 0 : index
    %c0_29 = arith.constant 0 : index
    %50 = vector.load %arg12[%c0_28, %c0_29] : memref<128x128xf32, #tpu.memory_space<vmem>>, vector<128x128xf32>
    tpu.vector_store %arg12[%c0_28, %c0_29], %49 {strides = array<i32>} : memref<128x128xf32, #tpu.memory_space<vmem>>, vector<128x128xf32>,
    %c0_30 = arith.constant 0 : index
    %c0_31 = arith.constant 0 : index
    %51 = vector.load %arg13[%c0_30, %c0_31] : memref<128x128xf32, #tpu.memory_space<vmem>>, vector<128x128xf32>
    %cst_32 = arith.constant dense<0.000000e+00> : vector<128x128xf32>
    %52 = tpu.matmul %46, %34, %cst_32 {dimension_numbers = #tpu.dot_dimension_numbers<[1], [0], [0], [1], [0, 0, 1, 1], [], []>} : vector<128x128xf32>, vector<128x128xf32>, vector<128x128xf32> -> vector<128x128xf32>
    %53 = arith.addf %51, %52 : vector<128x128xf32>
    %c0_33 = arith.constant 0 : index
    %c0_34 = arith.constant 0 : index
    %54 = vector.load %arg13[%c0_33, %c0_34] : memref<128x128xf32, #tpu.memory_space<vmem>>, vector<128x128xf32>
    tpu.vector_store %arg13[%c0_33, %c0_34], %53 {strides = array<i32>} : memref<128x128xf32, #tpu.memory_space<vmem>>, vector<128x128xf32>,
    %55 = arith.extui %15 : i1 to i32
    %c0_i32_35 = arith.constant 0 : i32
    %56 = arith.cmpi ne, %55, %c0_i32_35 : i32
    scf.if %56 {
      %c0_36 = arith.constant 0 : index
      %c0_37 = arith.constant 0 : index
      %57 = vector.load %arg12[%c0_36, %c0_37] : memref<128x128xf32, #tpu.memory_space<vmem>>, vector<128x128xf32>
      %c0_38 = arith.constant 0 : index
      %c0_39 = arith.constant 0 : index
      %58 = vector.load %arg13[%c0_38, %c0_39] : memref<128x128xf32, #tpu.memory_space<vmem>>, vector<128x128xf32>
      %cst_40 = arith.constant 9.99999997E-7 : f32
      %59 = vector.broadcast %cst_40 : f32 to vector<128x128xf32>
      %60 = arith.addf %58, %59 : vector<128x128xf32>
      %61 = tpu.reciprocal %60 {approx = true} : vector<128x128xf32> -> vector<128x128xf32>
      %62 = arith.mulf %57, %61 : vector<128x128xf32>
      %c0_41 = arith.constant 0 : index
      %c0_42 = arith.constant 0 : index
      %63 = vector.load %arg11[%c0_41, %c0_42] : memref<128x128xf32, #tpu.memory_space<vmem>>, vector<128x128xf32>
      tpu.vector_store %arg11[%c0_41, %c0_42], %62 {strides = array<i32>} : memref<128x128xf32, #tpu.memory_space<vmem>>, vector<128x128xf32>,
    } else {
    }
    return
  }
  func.func @transform_0(%arg0: i32, %arg1: memref<6xi32, #tpu.memory_space<smem>>) -> (i32, i32) {
    %c0_i32 = arith.constant 0 : i32
    %c0_i32_0 = arith.constant 0 : i32
    return %arg0, %c0_i32 : i32, i32
  }
  func.func @transform_1(%arg0: i32, %arg1: memref<6xi32, #tpu.memory_space<smem>>) -> (i32, i32) {
    %c0_i32 = arith.constant 0 : i32
    %c0_i32_0 = arith.constant 0 : i32
    return %arg0, %c0_i32 : i32, i32
  }
  func.func @transform_2(%arg0: i32, %arg1: memref<6xi32, #tpu.memory_space<smem>>) -> (i32, i32) {
    %c0_i32 = arith.constant 0 : i32
    %c0_i32_0 = arith.constant 0 : i32
    return %arg0, %c0_i32 : i32, i32
  }
  func.func @transform_3(%arg0: i32, %arg1: memref<6xi32, #tpu.memory_space<smem>>) -> (i32, i32) {
    %c0_i32 = arith.constant 0 : i32
    %c0_i32_0 = arith.constant 0 : i32
    return %arg0, %c0_i32 : i32, i32
  }
  func.func @transform_4(%arg0: i32, %arg1: memref<6xi32, #tpu.memory_space<smem>>) -> (i32, i32) {
    %c0_i32 = arith.constant 0 : i32
    %c0_i32_0 = arith.constant 0 : i32
    return %arg0, %c0_i32 : i32, i32
  }
  func.func @transform_5(%arg0: i32, %arg1: memref<6xi32, #tpu.memory_space<smem>>) -> (i32, i32) {
    %c0_i32 = arith.constant 0 : i32
    %c0_i32_0 = arith.constant 0 : i32
    return %arg0, %c0_i32 : i32, i32
  }
  func.func @transform_6(%arg0: i32, %arg1: memref<6xi32, #tpu.memory_space<smem>>) -> (i32, i32) {
    %c0_i32 = arith.constant 0 : i32
    %c0_i32_0 = arith.constant 0 : i32
    %c0_i32_1 = arith.constant 0 : i32
    return %c0_i32, %c0_i32_0 : i32, i32
  }
  func.func @transform_7(%arg0: i32, %arg1: memref<6xi32, #tpu.memory_space<smem>>) -> (i32, i32) {
    %c0_i32 = arith.constant 0 : i32
    %c0_i32_0 = arith.constant 0 : i32
    %c0_i32_1 = arith.constant 0 : i32
    return %c0_i32, %c0_i32_0 : i32, i32
  }
  func.func @transform_8(%arg0: i32, %arg1: memref<6xi32, #tpu.memory_space<smem>>) -> (i32, i32) {
    %c0_i32 = arith.constant 0 : i32
    %c0_i32_0 = arith.constant 0 : i32
    return %arg0, %c0_i32 : i32, i32
  }
  func.func @transform_9(%arg0: i32, %arg1: memref<6xi32, #tpu.memory_space<smem>>) -> (i32, i32) {
    %0 = arith.index_cast %arg0 : i32 to index
    %1 = memref.load %arg1[%0] : memref<6xi32, #tpu.memory_space<smem>>
    %c0_i32 = arith.constant 0 : i32
    %c0_i32_0 = arith.constant 0 : i32
    return %1, %c0_i32 : i32, i32
  }
}

</mosaic_0001>

<llo_original>
// kernel: custom-call.20
$region0: #{custom-call.20}
  %s0 = inlined_call_operand.vmem [shape: f32[480,32], index: 0, kind: output, shape index: {}]

// kernel: custom-call
$region0: #{custom-call}
  %s0 = inlined_call_operand.vmem [shape: u32[6], index: 0, kind: output, shape index: {}]

// kernel: ne.0
$region0: #{ne.0}
  #allocation2 [shape = 's32[1]{0}', space=sflag, size = 0x4, scoped, tag = 'scoped memory for ne.0']
  %s0 = inlined_call_operand.<no memory space> [shape: s32[], index: 0, kind: input, shape index: {}]
  %s1 = inlined_call_operand.hbm [shape: s32[480], index: 1, kind: output, shape index: {}]
  %v2 = vstv %s0
  $region1: #{ne.0} parent=0
    #allocation0 [shape = 'u8[2048]{0}', space=vmem, size = 0x800, scoped, tag = 'operand span for operand 1']
    #allocation1 [shape = 's32[1]{0}', space=sflag, size = 0x4, scoped, tag = 'scoped memory for ne.0']
    %3 = vsyncpa [#allocation1], 0
    %4 = vst [vmem:[#allocation0] sm:$0xf] %v2
    %s6 = ssub.s32 64, 64
    %7 = vsyncadd [#allocation1], %s6
    %s9 = sshll.u32 [#allocation0], 4
    %s10 = int_to_ptr.vmem [resolvable:$true] %s9
    %12 = dma.vmem_to_hbm [thread:$0]  %s10, 64, %s1, [#allocation1]
    %13 = dma.done [#allocation1], 64
    %14 = vsyncpa [#allocation1], 1

// kernel: multi_head_attention.2
$region0: #{multi_head_attention.2}
  #allocation0 [shape = 'u32[]', space=smem, size = 0x4, offset = 0x4, fixed_abs, tag = 'smem constant byte address 0x4 - core index']
  #allocation1 [shape = 'u32[144,128]{1,0:T(1,128)}', space=vmem, size = 0x12000, scoped, tag = 'internal scratch']
  %s0 = inlined_call_operand.vmem [shape: f32[256,128], index: 0, kind: input, shape index: {}]
  %s1 = inlined_call_operand.vmem [shape: f32[128,384], index: 1, kind: input, shape index: {}]
  %s2 = inlined_call_operand.vmem [shape: f32[256,384], index: 2, kind: output, shape index: {}]
  %s3 = sld [smem:[#allocation0]]
  $region41: #{multi_head_attention.2} parent=0
    _
  %s5 = ssub.s32 1, %s3
  %s6 = scalar_select 0, %s5, %s3
  loop: start=0, step=1, limit=4
  $region2: #{multi_head_attention.2} parent=0 // loop_pre_header
    _
  $region3: #{multi_head_attention.2} parent=0 // loop_header
    %s8 = sphi 0, %s12
    %p9 = scmp.ge.s32.totalorder %s8, 4
    %s18 = sphi 0, %s20
    %s21 = sphi 0, %s18
    %s22 = sphi 0, %s21
    %s38 = sphi 0, %s22
    %s42 = sphi 0, %s42
    %s44 = sphi 0, %s42
    %s45 = sphi 0, %s44
    %s59 = sphi 0, %s45
    %s65 = sphi 0, %s67
    %s68 = sphi 0, %s65
    %s69 = sphi 0, %s68
    %s85 = sphi 0, %s69
  $region4: #{multi_head_attention.2} parent=0 // loop_header_branch
    %11 = sbr.rel (%p9) target = $region8
  $region5: #{multi_head_attention.2} parent=0 // loop_body
    %s13 = ssub.s32 %s8, 1
    %s14 = ssub.s32 %s8, 2
    %s15 = sadd.s32 %s8, 1
    %s16 = ssub.s32 %s8, %s15
    %p17 = scmp.eq.s32.totalorder %s16, 0
    %s19 = sadd.s32 %s18, 1
    %s20 = scalar_select %p17, %s18, %s19
    %p23 = pneg %p17
    %p24 = scmp.eq.s32.totalorder %s8, 1
    %p25 = por %p23, %p24
    %p26 = scmp.ne.s32.totalorder %s18, %s21
    %p27 = scmp.eq.s32.totalorder %s8, 0
    %p28 = por %p26, %p27
    %p29 = scmp.ne.s32.totalorder %s18, %s21
    %p30 = scmp.eq.s32.totalorder %s13, 1
    %p31 = por %p29, %p30
    %p32 = scmp.ne.s32.totalorder %s21, %s22
    %p33 = scmp.eq.s32.totalorder %s13, 0
    %p34 = por %p32, %p33
    %p35 = scmp.ne.s32.totalorder %s21, %s22
    %p36 = scmp.eq.s32.totalorder %s14, 1
    %p37 = por %p35, %p36
    %p39 = scmp.ne.s32.totalorder %s22, %s38
    %p40 = scmp.eq.s32.totalorder %s14, 0
    %p41 = por %p39, %p40
    %s43 = sadd.s32 %s42, 1
    %p46 = scmp.eq.s32.totalorder %s8, 1
    %p47 = scmp.ne.s32.totalorder %s42, %s44
    %p48 = scmp.eq.s32.totalorder %s8, 0
    %p49 = por %p47, %p48
    %p50 = scmp.ne.s32.totalorder %s42, %s44
    %p51 = scmp.eq.s32.totalorder %s13, 1
    %p52 = por %p50, %p51
    %p53 = scmp.ne.s32.totalorder %s44, %s45
    %p54 = scmp.eq.s32.totalorder %s13, 0
    %p55 = por %p53, %p54
    %p56 = scmp.ne.s32.totalorder %s44, %s45
    %p57 = scmp.eq.s32.totalorder %s14, 1
    %p58 = por %p56, %p57
    %p60 = scmp.ne.s32.totalorder %s45, %s59
    %p61 = scmp.eq.s32.totalorder %s14, 0
    %p62 = por %p60, %p61
    %s63 = ssub.s32 %s8, %s15
    %p64 = scmp.eq.s32.totalorder %s63, 0
    %s66 = sadd.s32 %s65, 1
    %s67 = scalar_select %p64, %s65, %s66
    %p70 = pneg %p64
    %p71 = scmp.eq.s32.totalorder %s8, 1
    %p72 = por %p70, %p71
    %p73 = scmp.ne.s32.totalorder %s65, %s68
    %p74 = scmp.eq.s32.totalorder %s8, 0
    %p75 = por %p73, %p74
    %p76 = scmp.ne.s32.totalorder %s65, %s68
    %p77 = scmp.eq.s32.totalorder %s13, 1
    %p78 = por %p76, %p77
    %p79 = scmp.ne.s32.totalorder %s68, %s69
    %p80 = scmp.eq.s32.totalorder %s13, 0
    %p81 = por %p79, %p80
    %p82 = scmp.ne.s32.totalorder %s68, %s69
    %p83 = scmp.eq.s32.totalorder %s14, 1
    %p84 = por %p82, %p83
    %p86 = scmp.ne.s32.totalorder %s69, %s85
    %p87 = scmp.eq.s32.totalorder %s14, 0
    %p88 = por %p86, %p87
    %p89 = scmp.le.s32.totalorder 1, %s8
    %p90 = scmp.lt.s32.totalorder %s8, 3
    %p91 = pnand %p89, %p90
    %p92 = pneg %p91
    // Predicated region
    $region9: #{multi_head_attention.2} parent=5 // pred_check
      _
    $region10: #{multi_head_attention.2} parent=5 // pred_check_branch
      %94 = sbr.rel (%p91) target = $region12
    $region11: #{multi_head_attention.2} parent=5 // pred_region
      %s95 = ssub.s32 %s8, 1
      // Predicated region
      $region13: #{multi_head_attention.2} parent=11 // pred_check
        %p96 = pneg %p55
      $region14: #{multi_head_attention.2} parent=11 // pred_check_branch
        %98 = sbr.rel (%p96) target = $region16
      $region15: #{multi_head_attention.2} parent=11 // pred_region
        _
      $region16: #{multi_head_attention.2} parent=11 // pred_fallthru
        _
    $region12: #{multi_head_attention.2} parent=5 // pred_fallthru
      _
    %p99 = scmp.lt.s32.totalorder %s8, 2
    // Predicated region
    $region17: #{multi_head_attention.2} parent=5 // pred_check
      %p100 = pneg %p99
    $region18: #{multi_head_attention.2} parent=5 // pred_check_branch
      %102 = sbr.rel (%p100) target = $region20
    $region19: #{multi_head_attention.2} parent=5 // pred_region
      // Predicated region
      $region21: #{multi_head_attention.2} parent=19 // pred_check
        %p103 = pneg %p28
      $region22: #{multi_head_attention.2} parent=19 // pred_check_branch
        %105 = sbr.rel (%p103) target = $region24
      $region23: #{multi_head_attention.2} parent=19 // pred_region
        %s106 = smul.u32 16, %s8
        %p107 = scmp.lt.s32.totalorder %s106, 31
        %s108 = scalar_select %p107, %s106, 31
        %s109 = smul.addr %s108, 8
        %s110 = scalar_lea.vmem %s0, %s109
        %s111 = smul.u32 16, %s8
      $region24: #{multi_head_attention.2} parent=19 // pred_fallthru
        _
    $region20: #{multi_head_attention.2} parent=5 // pred_fallthru
      _
    %p112 = scmp.le.s32.totalorder 1, %s8
    %p113 = scmp.lt.s32.totalorder %s8, 3
    %p114 = pnand %p112, %p113
    %p115 = pneg %p114
    // Predicated region
    $region25: #{multi_head_attention.2} parent=5 // pred_check
      _
    $region26: #{multi_head_attention.2} parent=5 // pred_check_branch
      %117 = sbr.rel (%p114) target = $region28
    $region27: #{multi_head_attention.2} parent=5 // pred_region
      %s118 = ssub.s32 %s8, 1
      %s119 = smul.u32 16, %s13
      %p120 = scmp.lt.s32.totalorder %s119, 31
      %s121 = scalar_select %p120, %s119, 31
      %s122 = smul.addr %s121, 8
      %s123 = scalar_lea.vmem %s0, %s122
      %p124 = pneg %p34
      %p125 = pneg %p31
      %p126 = pneg %p55
      %p127 = pneg %p52
      %p128 = pneg %p81
      %p129 = pneg %p78
      %s130 = smul.u32 16, %s13
      %p131 = scmp.lt.s32.totalorder %s130, 31
      %s132 = scalar_select %p131, %s130, 31
      %s133 = smul.addr %s132, 3
      %s134 = smul.addr %s133, 8
      %s135 = scalar_lea.vmem %s2, %s134
      %s136 = smul.u32 16, %s13
      %p137 = scmp.lt.s32.totalorder %s136, 31
      %s138 = scalar_select %p137, %s136, 31
      %s139 = smul.addr %s138, 8
      %s140 = scalar_lea.vmem %s0, %s139
      %s141 = smul.u32 16, %s13
      %s142 = smul.u32 16, %s13
      %p143 = scmp.lt.s32.totalorder %s142, 31
      %s144 = scalar_select %p143, %s142, 31
      %s145 = smul.addr %s144, 3
      %s146 = smul.addr %s145, 8
      %s147 = scalar_lea.vmem %s2, %s146
      %s148 = smul.u32 16, %s13
      %v149 = vld [vmem:[%s140] sm:$0xff]
      %v150 = vld [vmem:[%s140 + $0x8] sm:$0xff]
      %v151 = vld [vmem:[%s140 + $0x10] sm:$0xff]
      %v152 = vld [vmem:[%s140 + $0x18] sm:$0xff]
      %v153 = vld [vmem:[%s140 + $0x20] sm:$0xff]
      %v154 = vld [vmem:[%s140 + $0x28] sm:$0xff]
      %v155 = vld [vmem:[%s140 + $0x30] sm:$0xff]
      %v156 = vld [vmem:[%s140 + $0x38] sm:$0xff]
      %v157 = vld [vmem:[%s140 + $0x40] sm:$0xff]
      %v158 = vld [vmem:[%s140 + $0x48] sm:$0xff]
      %v159 = vld [vmem:[%s140 + $0x50] sm:$0xff]
      %v160 = vld [vmem:[%s140 + $0x58] sm:$0xff]
      %v161 = vld [vmem:[%s140 + $0x60] sm:$0xff]
      %v162 = vld [vmem:[%s140 + $0x68] sm:$0xff]
      %v163 = vld [vmem:[%s140 + $0x70] sm:$0xff]
      %v164 = vld [vmem:[%s140 + $0x78] sm:$0xff]
      %v165 = vld [vmem:[%s1] sm:$0xff]
      %v166 = vld [vmem:[%s1 + $0x8] sm:$0xff]
      %v167 = vld [vmem:[%s1 + $0x10] sm:$0xff]
      %v168 = vld [vmem:[%s1 + $0x18] sm:$0xff]
      %v169 = vld [vmem:[%s1 + $0x20] sm:$0xff]
      %v170 = vld [vmem:[%s1 + $0x28] sm:$0xff]
      %v171 = vld [vmem:[%s1 + $0x30] sm:$0xff]
      %v172 = vld [vmem:[%s1 + $0x38] sm:$0xff]
      %v173 = vld [vmem:[%s1 + $0x40] sm:$0xff]
      %v174 = vld [vmem:[%s1 + $0x48] sm:$0xff]
      %v175 = vld [vmem:[%s1 + $0x50] sm:$0xff]
      %v176 = vld [vmem:[%s1 + $0x58] sm:$0xff]
      %v177 = vld [vmem:[%s1 + $0x60] sm:$0xff]
      %v178 = vld [vmem:[%s1 + $0x68] sm:$0xff]
      %v179 = vld [vmem:[%s1 + $0x70] sm:$0xff]
      %v180 = vld [vmem:[%s1 + $0x78] sm:$0xff]
      %v181 = vld [vmem:[%s1 + $0x80] sm:$0xff]
      %v182 = vld [vmem:[%s1 + $0x88] sm:$0xff]
      %v183 = vld [vmem:[%s1 + $0x90] sm:$0xff]
      %v184 = vld [vmem:[%s1 + $0x98] sm:$0xff]
      %v185 = vld [vmem:[%s1 + $0xa0] sm:$0xff]
      %v186 = vld [vmem:[%s1 + $0xa8] sm:$0xff]
      %v187 = vld [vmem:[%s1 + $0xb0] sm:$0xff]
      %v188 = vld [vmem:[%s1 + $0xb8] sm:$0xff]
      %v189 = vld [vmem:[%s1 + $0xc0] sm:$0xff]
      %v190 = vld [vmem:[%s1 + $0xc8] sm:$0xff]
      %v191 = vld [vmem:[%s1 + $0xd0] sm:$0xff]
      %v192 = vld [vmem:[%s1 + $0xd8] sm:$0xff]
      %v193 = vld [vmem:[%s1 + $0xe0] sm:$0xff]
      %v194 = vld [vmem:[%s1 + $0xe8] sm:$0xff]
      %v195 = vld [vmem:[%s1 + $0xf0] sm:$0xff]
      %v196 = vld [vmem:[%s1 + $0xf8] sm:$0xff]
      %v197 = vld [vmem:[%s1 + $0x100] sm:$0xff]
      %v198 = vld [vmem:[%s1 + $0x108] sm:$0xff]
      %v199 = vld [vmem:[%s1 + $0x110] sm:$0xff]
      %v200 = vld [vmem:[%s1 + $0x118] sm:$0xff]
      %v201 = vld [vmem:[%s1 + $0x120] sm:$0xff]
      %v202 = vld [vmem:[%s1 + $0x128] sm:$0xff]
      %v203 = vld [vmem:[%s1 + $0x130] sm:$0xff]
      %v204 = vld [vmem:[%s1 + $0x138] sm:$0xff]
      %v205 = vld [vmem:[%s1 + $0x140] sm:$0xff]
      %v206 = vld [vmem:[%s1 + $0x148] sm:$0xff]
      %v207 = vld [vmem:[%s1 + $0x150] sm:$0xff]
      %v208 = vld [vmem:[%s1 + $0x158] sm:$0xff]
      %v209 = vld [vmem:[%s1 + $0x160] sm:$0xff]
      %v210 = vld [vmem:[%s1 + $0x168] sm:$0xff]
      %v211 = vld [vmem:[%s1 + $0x170] sm:$0xff]
      %v212 = vld [vmem:[%s1 + $0x178] sm:$0xff]
      %213 = vmatprep.subr.mxu0 %v211
      %214 = vmatpush1.msra.mxu0 %v210
      %215 = vmatprep.subr.mxu0 %v208
      %216 = vmatpush1.msra.mxu0 %v207
      %217 = vmatprep.subr.mxu0 %v205
      %218 = vmatpush1.msra.mxu0 %v204
      %219 = vmatprep.subr.mxu0 %v202
      %220 = vmatpush1.msra.mxu0 %v201
      %221 = vmatprep.subr.mxu0 %v199
      %222 = vmatpush1.msra.mxu0 %v198
      %223 = vmatprep.subr.mxu0 %v196
      %224 = vmatpush1.msra.mxu0 %v195
      %225 = vmatprep.subr.mxu0 %v193
      %226 = vmatpush1.msra.mxu0 %v192
      %227 = vmatprep.subr.mxu0 %v190
      %228 = vmatpush1.msra.mxu0 %v189
      %229 = vmatprep.subr.mxu0 %v187
      %230 = vmatpush1.msra.mxu0 %v186
      %231 = vmatprep.subr.mxu0 %v184
      %232 = vmatpush1.msra.mxu0 %v183
      %233 = vmatprep.subr.mxu0 %v181
      %234 = vmatpush1.msra.mxu0 %v180
      %235 = vmatprep.subr.mxu0 %v178
      %236 = vmatpush1.msra.mxu0 %v177
      %237 = vmatprep.subr.mxu0 %v175
      %238 = vmatpush1.msra.mxu0 %v174
      %239 = vmatprep.subr.mxu0 %v172
      %240 = vmatpush1.msra.mxu0 %v171
      %241 = vmatprep.subr.mxu0 %v169
      %242 = vmatpush1.msra.mxu0 %v168
      %243 = vmatprep.subr.mxu0 %v166
      %244 = vmatpush1.msra.mxu0 %v165
      %245 = vmatprep.subr.mxu0 0.0
      %246 = vmatpush2.msra.mxu0 0.0
      %247 = vmatprep.subr.mxu0 0.0
      %248 = vmatpush2.msra.mxu0 0.0
      %249 = vmatprep.subr.mxu0 0.0
      %250 = vmatpush2.msra.mxu0 0.0
      %251 = vmatprep.subr.mxu0 0.0
      %252 = vmatpush2.msra.mxu0 0.0
      %253 = vmatprep.subr.mxu0 0.0
      %254 = vmatpush2.msra.mxu0 0.0
      %255 = vmatprep.subr.mxu0 0.0
      %256 = vmatpush2.msra.mxu0 0.0
      %257 = vmatprep.subr.mxu0 0.0
      %258 = vmatpush2.msra.mxu0 0.0
      %259 = vmatprep.subr.mxu0 0.0
      %260 = vmatpush2.msra.mxu0 0.0
      %261 = vmatprep.subr.mxu0 0.0
      %262 = vmatpush2.msra.mxu0 0.0
      %263 = vmatprep.subr.mxu0 0.0
      %264 = vmatpush2.msra.mxu0 0.0
      %265 = vmatprep.subr.mxu0 0.0
      %266 = vmatpush2.msra.mxu0 0.0
      %267 = vmatprep.subr.mxu0 0.0
      %268 = vmatpush2.msra.mxu0 0.0
      %269 = vmatprep.subr.mxu0 0.0
      %270 = vmatpush2.msra.mxu0 0.0
      %271 = vmatprep.subr.mxu0 0.0
      %272 = vmatpush2.msra.mxu0 0.0
      %273 = vmatprep.subr.mxu0 0.0
      %274 = vmatpush2.msra.mxu0 0.0
      %275 = vmatprep.subr.mxu0 0.0
      %276 = vmatpush2.msra.mxu0 0.0
      %277 = vmatprep.mubr.f32.mxu0 0.0
      %278 = vmatmul.mubr.f32.gmra.mxu0 %v149
      %v279 = vpop.f32.mrf.mxu0
      %v280 = vadd.f32 0.0, %v279
      %v281 = vpop.f32.mrf.mxu0
      %v282 = vadd.f32 0.0, %v281
      %283 = vmatprep.mubr.f32.mxu0 0.0
      %284 = vmatmul.mubr.f32.gmra.mxu0 %v150
      %v285 = vpop.f32.mrf.mxu0
      %v286 = vadd.f32 0.0, %v285
      %v287 = vpop.f32.mrf.mxu0
      %v288 = vadd.f32 0.0, %v287
      %289 = vmatprep.mubr.f32.mxu0 0.0
      %290 = vmatmul.mubr.f32.gmra.mxu0 %v151
      %v291 = vpop.f32.mrf.mxu0
      %v292 = vadd.f32 0.0, %v291
      %v293 = vpop.f32.mrf.mxu0
      %v294 = vadd.f32 0.0, %v293
      %295 = vmatprep.mubr.f32.mxu0 0.0
      %296 = vmatmul.mubr.f32.gmra.mxu0 %v152
      %v297 = vpop.f32.mrf.mxu0
      %v298 = vadd.f32 0.0, %v297
      %v299 = vpop.f32.mrf.mxu0
      %v300 = vadd.f32 0.0, %v299
      %301 = vmatprep.mubr.f32.mxu0 0.0
      %302 = vmatmul.mubr.f32.gmra.mxu0 %v153
      %v303 = vpop.f32.mrf.mxu0
      %v304 = vadd.f32 0.0, %v303
      %v305 = vpop.f32.mrf.mxu0
      %v306 = vadd.f32 0.0, %v305
      %307 = vmatprep.mubr.f32.mxu0 0.0
      %308 = vmatmul.mubr.f32.gmra.mxu0 %v154
      %v309 = vpop.f32.mrf.mxu0
      %v310 = vadd.f32 0.0, %v309
      %v311 = vpop.f32.mrf.mxu0
      %v312 = vadd.f32 0.0, %v311
      %313 = vmatprep.mubr.f32.mxu0 0.0
      %314 = vmatmul.mubr.f32.gmra.mxu0 %v155
      %v315 = vpop.f32.mrf.mxu0
      %v316 = vadd.f32 0.0, %v315
      %v317 = vpop.f32.mrf.mxu0
      %v318 = vadd.f32 0.0, %v317
      %319 = vmatprep.mubr.f32.mxu0 0.0
      %320 = vmatmul.mubr.f32.gmra.mxu0 %v156
      %v321 = vpop.f32.mrf.mxu0
      %v322 = vadd.f32 0.0, %v321
      %v323 = vpop.f32.mrf.mxu0
      %v324 = vadd.f32 0.0, %v323
      %325 = vmatprep.mubr.f32.mxu0 0.0
      %326 = vmatmul.mubr.f32.gmra.mxu0 %v157
      %v327 = vpop.f32.mrf.mxu0
      %v328 = vadd.f32 0.0, %v327
      %v329 = vpop.f32.mrf.mxu0
      %v330 = vadd.f32 0.0, %v329
      %331 = vmatprep.mubr.f32.mxu0 0.0
      %332 = vmatmul.mubr.f32.gmra.mxu0 %v158
      %v333 = vpop.f32.mrf.mxu0
      %v334 = vadd.f32 0.0, %v333
      %v335 = vpop.f32.mrf.mxu0
      %v336 = vadd.f32 0.0, %v335
      %337 = vmatprep.mubr.f32.mxu0 0.0
      %338 = vmatmul.mubr.f32.gmra.mxu0 %v159
      %v339 = vpop.f32.mrf.mxu0
      %v340 = vadd.f32 0.0, %v339
      %v341 = vpop.f32.mrf.mxu0
      %v342 = vadd.f32 0.0, %v341
      %343 = vmatprep.mubr.f32.mxu0 0.0
      %344 = vmatmul.mubr.f32.gmra.mxu0 %v160
      %v345 = vpop.f32.mrf.mxu0
      %v346 = vadd.f32 0.0, %v345
      %v347 = vpop.f32.mrf.mxu0
      %v348 = vadd.f32 0.0, %v347
      %349 = vmatprep.mubr.f32.mxu0 0.0
      %350 = vmatmul.mubr.f32.gmra.mxu0 %v161
      %v351 = vpop.f32.mrf.mxu0
      %v352 = vadd.f32 0.0, %v351
      %v353 = vpop.f32.mrf.mxu0
      %v354 = vadd.f32 0.0, %v353
      %355 = vmatprep.mubr.f32.mxu0 0.0
      %356 = vmatmul.mubr.f32.gmra.mxu0 %v162
      %v357 = vpop.f32.mrf.mxu0
      %v358 = vadd.f32 0.0, %v357
      %v359 = vpop.f32.mrf.mxu0
      %v360 = vadd.f32 0.0, %v359
      %361 = vmatprep.mubr.f32.mxu0 0.0
      %362 = vmatmul.mubr.f32.gmra.mxu0 %v163
      %v363 = vpop.f32.mrf.mxu0
      %v364 = vadd.f32 0.0, %v363
      %v365 = vpop.f32.mrf.mxu0
      %v366 = vadd.f32 0.0, %v365
      %367 = vmatprep.mubr.f32.mxu0 0.0
      %368 = vmatmul.mubr.f32.gmra.mxu0 %v164
      %v369 = vpop.f32.mrf.mxu0
      %v370 = vadd.f32 0.0, %v369
      %v371 = vpop.f32.mrf.mxu0
      %v372 = vadd.f32 0.0, %v371
      %373 = vdwg.mxu0
      %374 = vmatprep.subr.mxu0 0.0
      %375 = vmatpush1.msra.mxu0 %v212
      %376 = vmatprep.subr.mxu0 0.0
      %377 = vmatpush1.msra.mxu0 %v209
      %378 = vmatprep.subr.mxu0 0.0
      %379 = vmatpush1.msra.mxu0 %v206
      %380 = vmatprep.subr.mxu0 0.0
      %381 = vmatpush1.msra.mxu0 %v203
      %382 = vmatprep.subr.mxu0 0.0
      %383 = vmatpush1.msra.mxu0 %v200
      %384 = vmatprep.subr.mxu0 0.0
      %385 = vmatpush1.msra.mxu0 %v197
      %386 = vmatprep.subr.mxu0 0.0
      %387 = vmatpush1.msra.mxu0 %v194
      %388 = vmatprep.subr.mxu0 0.0
      %389 = vmatpush1.msra.mxu0 %v191
      %390 = vmatprep.subr.mxu0 0.0
      %391 = vmatpush1.msra.mxu0 %v188
      %392 = vmatprep.subr.mxu0 0.0
      %393 = vmatpush1.msra.mxu0 %v185
      %394 = vmatprep.subr.mxu0 0.0
      %395 = vmatpush1.msra.mxu0 %v182
      %396 = vmatprep.subr.mxu0 0.0
      %397 = vmatpush1.msra.mxu0 %v179
      %398 = vmatprep.subr.mxu0 0.0
      %399 = vmatpush1.msra.mxu0 %v176
      %400 = vmatprep.subr.mxu0 0.0
      %401 = vmatpush1.msra.mxu0 %v173
      %402 = vmatprep.subr.mxu0 0.0
      %403 = vmatpush1.msra.mxu0 %v170
      %404 = vmatprep.subr.mxu0 0.0
      %405 = vmatpush1.msra.mxu0 %v167
      %406 = vmatprep.subr.mxu0 0.0
      %407 = vmatpush2.msra.mxu0 0.0
      %408 = vmatprep.subr.mxu0 0.0
      %409 = vmatpush2.msra.mxu0 0.0
      %410 = vmatprep.subr.mxu0 0.0
      %411 = vmatpush2.msra.mxu0 0.0
      %412 = vmatprep.subr.mxu0 0.0
      %413 = vmatpush2.msra.mxu0 0.0
      %414 = vmatprep.subr.mxu0 0.0
      %415 = vmatpush2.msra.mxu0 0.0
      %416 = vmatprep.subr.mxu0 0.0
      %417 = vmatpush2.msra.mxu0 0.0
      %418 = vmatprep.subr.mxu0 0.0
      %419 = vmatpush2.msra.mxu0 0.0
      %420 = vmatprep.subr.mxu0 0.0
      %421 = vmatpush2.msra.mxu0 0.0
      %422 = vmatprep.subr.mxu0 0.0
      %423 = vmatpush2.msra.mxu0 0.0
      %424 = vmatprep.subr.mxu0 0.0
      %425 = vmatpush2.msra.mxu0 0.0
      %426 = vmatprep.subr.mxu0 0.0
      %427 = vmatpush2.msra.mxu0 0.0
      %428 = vmatprep.subr.mxu0 0.0
      %429 = vmatpush2.msra.mxu0 0.0
      %430 = vmatprep.subr.mxu0 0.0
      %431 = vmatpush2.msra.mxu0 0.0
      %432 = vmatprep.subr.mxu0 0.0
      %433 = vmatpush2.msra.mxu0 0.0
      %434 = vmatprep.subr.mxu0 0.0
      %435 = vmatpush2.msra.mxu0 0.0
      %436 = vmatprep.subr.mxu0 0.0
      %437 = vmatpush2.msra.mxu0 0.0
      %438 = vmatprep.mubr.f32.mxu0 0.0
      %439 = vmatmul.mubr.f32.gmra.mxu0 %v149
      %v440 = vpop.f32.mrf.mxu0
      %v441 = vadd.f32 0.0, %v440
      %v442 = vpop.f32.mrf.mxu0
      %443 = vmatprep.mubr.f32.mxu0 0.0
      %444 = vmatmul.mubr.f32.gmra.mxu0 %v150
      %v445 = vpop.f32.mrf.mxu0
      %v446 = vadd.f32 0.0, %v445
      %v447 = vpop.f32.mrf.mxu0
      %448 = vmatprep.mubr.f32.mxu0 0.0
      %449 = vmatmul.mubr.f32.gmra.mxu0 %v151
      %v450 = vpop.f32.mrf.mxu0
      %v451 = vadd.f32 0.0, %v450
      %v452 = vpop.f32.mrf.mxu0
      %453 = vmatprep.mubr.f32.mxu0 0.0
      %454 = vmatmul.mubr.f32.gmra.mxu0 %v152
      %v455 = vpop.f32.mrf.mxu0
      %v456 = vadd.f32 0.0, %v455
      %v457 = vpop.f32.mrf.mxu0
      %458 = vmatprep.mubr.f32.mxu0 0.0
      %459 = vmatmul.mubr.f32.gmra.mxu0 %v153
      %v460 = vpop.f32.mrf.mxu0
      %v461 = vadd.f32 0.0, %v460
      %v462 = vpop.f32.mrf.mxu0
      %463 = vmatprep.mubr.f32.mxu0 0.0
      %464 = vmatmul.mubr.f32.gmra.mxu0 %v154
      %v465 = vpop.f32.mrf.mxu0
      %v466 = vadd.f32 0.0, %v465
      %v467 = vpop.f32.mrf.mxu0
      %468 = vmatprep.mubr.f32.mxu0 0.0
      %469 = vmatmul.mubr.f32.gmra.mxu0 %v155
      %v470 = vpop.f32.mrf.mxu0
      %v471 = vadd.f32 0.0, %v470
      %v472 = vpop.f32.mrf.mxu0
      %473 = vmatprep.mubr.f32.mxu0 0.0
      %474 = vmatmul.mubr.f32.gmra.mxu0 %v156
      %v475 = vpop.f32.mrf.mxu0
      %v476 = vadd.f32 0.0, %v475
      %v477 = vpop.f32.mrf.mxu0
      %478 = vmatprep.mubr.f32.mxu0 0.0
      %479 = vmatmul.mubr.f32.gmra.mxu0 %v157
      %v480 = vpop.f32.mrf.mxu0
      %v481 = vadd.f32 0.0, %v480
      %v482 = vpop.f32.mrf.mxu0
      %483 = vmatprep.mubr.f32.mxu0 0.0
      %484 = vmatmul.mubr.f32.gmra.mxu0 %v158
      %v485 = vpop.f32.mrf.mxu0
      %v486 = vadd.f32 0.0, %v485
      %v487 = vpop.f32.mrf.mxu0
      %488 = vmatprep.mubr.f32.mxu0 0.0
      %489 = vmatmul.mubr.f32.gmra.mxu0 %v159
      %v490 = vpop.f32.mrf.mxu0
      %v491 = vadd.f32 0.0, %v490
      %v492 = vpop.f32.mrf.mxu0
      %493 = vmatprep.mubr.f32.mxu0 0.0
      %494 = vmatmul.mubr.f32.gmra.mxu0 %v160
      %v495 = vpop.f32.mrf.mxu0
      %v496 = vadd.f32 0.0, %v495
      %v497 = vpop.f32.mrf.mxu0
      %498 = vmatprep.mubr.f32.mxu0 0.0
      %499 = vmatmul.mubr.f32.gmra.mxu0 %v161
      %v500 = vpop.f32.mrf.mxu0
      %v501 = vadd.f32 0.0, %v500
      %v502 = vpop.f32.mrf.mxu0
      %503 = vmatprep.mubr.f32.mxu0 0.0
      %504 = vmatmul.mubr.f32.gmra.mxu0 %v162
      %v505 = vpop.f32.mrf.mxu0
      %v506 = vadd.f32 0.0, %v505
      %v507 = vpop.f32.mrf.mxu0
      %508 = vmatprep.mubr.f32.mxu0 0.0
      %509 = vmatmul.mubr.f32.gmra.mxu0 %v163
      %v510 = vpop.f32.mrf.mxu0
      %v511 = vadd.f32 0.0, %v510
      %v512 = vpop.f32.mrf.mxu0
      %513 = vmatprep.mubr.f32.mxu0 0.0
      %514 = vmatmul.mubr.f32.gmra.mxu0 %v164
      %v515 = vpop.f32.mrf.mxu0
      %v516 = vadd.f32 0.0, %v515
      %v517 = vpop.f32.mrf.mxu0
      %518 = vdwg.mxu0
      %519 = vst [vmem:[%s147] sm:$0xff] %v280
      %520 = vst [vmem:[%s147 + $0x8] sm:$0xff] %v282
      %521 = vst [vmem:[%s147 + $0x10] sm:$0xff] %v441
      %522 = vst [vmem:[%s147 + $0x18] sm:$0xff] %v286
      %523 = vst [vmem:[%s147 + $0x20] sm:$0xff] %v288
      %524 = vst [vmem:[%s147 + $0x28] sm:$0xff] %v446
      %525 = vst [vmem:[%s147 + $0x30] sm:$0xff] %v292
      %526 = vst [vmem:[%s147 + $0x38] sm:$0xff] %v294
      %527 = vst [vmem:[%s147 + $0x40] sm:$0xff] %v451
      %528 = vst [vmem:[%s147 + $0x48] sm:$0xff] %v298
      %529 = vst [vmem:[%s147 + $0x50] sm:$0xff] %v300
      %530 = vst [vmem:[%s147 + $0x58] sm:$0xff] %v456
      %531 = vst [vmem:[%s147 + $0x60] sm:$0xff] %v304
      %532 = vst [vmem:[%s147 + $0x68] sm:$0xff] %v306
      %533 = vst [vmem:[%s147 + $0x70] sm:$0xff] %v461
      %534 = vst [vmem:[%s147 + $0x78] sm:$0xff] %v310
      %535 = vst [vmem:[%s147 + $0x80] sm:$0xff] %v312
      %536 = vst [vmem:[%s147 + $0x88] sm:$0xff] %v466
      %537 = vst [vmem:[%s147 + $0x90] sm:$0xff] %v316
      %538 = vst [vmem:[%s147 + $0x98] sm:$0xff] %v318
      %539 = vst [vmem:[%s147 + $0xa0] sm:$0xff] %v471
      %540 = vst [vmem:[%s147 + $0xa8] sm:$0xff] %v322
      %541 = vst [vmem:[%s147 + $0xb0] sm:$0xff] %v324
      %542 = vst [vmem:[%s147 + $0xb8] sm:$0xff] %v476
      %543 = vst [vmem:[%s147 + $0xc0] sm:$0xff] %v328
      %544 = vst [vmem:[%s147 + $0xc8] sm:$0xff] %v330
      %545 = vst [vmem:[%s147 + $0xd0] sm:$0xff] %v481
      %546 = vst [vmem:[%s147 + $0xd8] sm:$0xff] %v334
      %547 = vst [vmem:[%s147 + $0xe0] sm:$0xff] %v336
      %548 = vst [vmem:[%s147 + $0xe8] sm:$0xff] %v486
      %549 = vst [vmem:[%s147 + $0xf0] sm:$0xff] %v340
      %550 = vst [vmem:[%s147 + $0xf8] sm:$0xff] %v342
      %551 = vst [vmem:[%s147 + $0x100] sm:$0xff] %v491
      %552 = vst [vmem:[%s147 + $0x108] sm:$0xff] %v346
      %553 = vst [vmem:[%s147 + $0x110] sm:$0xff] %v348
      %554 = vst [vmem:[%s147 + $0x118] sm:$0xff] %v496
      %555 = vst [vmem:[%s147 + $0x120] sm:$0xff] %v352
      %556 = vst [vmem:[%s147 + $0x128] sm:$0xff] %v354
      %557 = vst [vmem:[%s147 + $0x130] sm:$0xff] %v501
      %558 = vst [vmem:[%s147 + $0x138] sm:$0xff] %v358
      %559 = vst [vmem:[%s147 + $0x140] sm:$0xff] %v360
      %560 = vst [vmem:[%s147 + $0x148] sm:$0xff] %v506
      %561 = vst [vmem:[%s147 + $0x150] sm:$0xff] %v364
      %562 = vst [vmem:[%s147 + $0x158] sm:$0xff] %v366
      %563 = vst [vmem:[%s147 + $0x160] sm:$0xff] %v511
      %564 = vst [vmem:[%s147 + $0x168] sm:$0xff] %v370
      %565 = vst [vmem:[%s147 + $0x170] sm:$0xff] %v372
      %566 = vst [vmem:[%s147 + $0x178] sm:$0xff] %v516
      %s567 = smul.u32 16, %s13
      %p568 = scmp.lt.s32.totalorder %s567, 31
      %s569 = scalar_select %p568, %s567, 31
      %s570 = smul.addr %s569, 3
      %s571 = smul.addr %s570, 8
      %s572 = scalar_lea.vmem %s2, %s571
      // Predicated region
      $region29: #{multi_head_attention.2} parent=27 // pred_check
        %p573 = pneg %p78
      $region30: #{multi_head_attention.2} parent=27 // pred_check_branch
        %575 = sbr.rel (%p573) target = $region32
      $region31: #{multi_head_attention.2} parent=27 // pred_region
        %s576 = smul.u32 16, %s13
      $region32: #{multi_head_attention.2} parent=27 // pred_fallthru
        _
    $region28: #{multi_head_attention.2} parent=5 // pred_fallthru
      _
    %p577 = scmp.le.s32.totalorder 2, %s8
    // Predicated region
    $region33: #{multi_head_attention.2} parent=5 // pred_check
      %p578 = pneg %p577
    $region34: #{multi_head_attention.2} parent=5 // pred_check_branch
      %580 = sbr.rel (%p578) target = $region36
    $region35: #{multi_head_attention.2} parent=5 // pred_region
      %s581 = ssub.s32 %s8, 2
      // Predicated region
      $region37: #{multi_head_attention.2} parent=35 // pred_check
        %p582 = pneg %p84
      $region38: #{multi_head_attention.2} parent=35 // pred_check_branch
        %584 = sbr.rel (%p582) target = $region40
      $region39: #{multi_head_attention.2} parent=35 // pred_region
        %s585 = smul.u32 16, %s14
        %p586 = scmp.lt.s32.totalorder %s585, 31
        %s587 = scalar_select %p586, %s585, 31
        %s588 = smul.addr %s587, 3
        %s589 = smul.addr %s588, 8
        %s590 = scalar_lea.vmem %s2, %s589
      $region40: #{multi_head_attention.2} parent=35 // pred_fallthru
        _
    $region36: #{multi_head_attention.2} parent=5 // pred_fallthru
      _
  $region6: #{multi_head_attention.2} parent=0 // loop_footer
    %s12 = sadd.s32 1, %s8
  $region7: #{multi_head_attention.2} parent=0 // loop_footer_branch
    %7 = sbr.rel target = $region3
  $region8: #{multi_head_attention.2} parent=0 // loop_exit
    _

// kernel: multi_head_attention.3
$region0: #{multi_head_attention.3}
  #allocation0 [shape = 'u32[]', space=smem, size = 0x4, offset = 0x4, fixed_abs, tag = 'smem constant byte address 0x4 - core index']
  #allocation1 [shape = 'u32[144,128]{1,0:T(1,128)}', space=vmem, size = 0x12000, scoped, tag = 'internal scratch']
  #allocation2 [shape = 'f32[128,128]{1,0:T(8,128)}', space=vmem, size = 0x10000, scoped, tag = 'scratch operand']
  #allocation3 [shape = 'f32[128,128]{1,0:T(8,128)}', space=vmem, size = 0x10000, scoped, tag = 'scratch operand']
  #allocation4 [shape = 's32[1]{0}', space=sflag, size = 0x4, scoped, tag = 'scoped memory for multi_head_attention.3']
  #allocation5 [shape = 'u8[512]{0}', space=smem, size = 0x200, scoped, tag = 'prefetched SMEM operand 0']
  %s0 = inlined_call_operand.vmem [shape: s32[6], index: 0, kind: input, shape index: {}]
  %s1 = inlined_call_operand.vmem [shape: f32[768,128], index: 1, kind: input, shape index: {}]
  %s2 = inlined_call_operand.vmem [shape: f32[768,128], index: 2, kind: input, shape index: {}]
  %s3 = inlined_call_operand.vmem [shape: f32[768,128], index: 3, kind: input, shape index: {}]
  %s4 = inlined_call_operand.vmem [shape: f32[768,128], index: 4, kind: input, shape index: {}]
  %s5 = inlined_call_operand.vmem [shape: f32[768,1], index: 5, kind: input, shape index: {}]
  %s6 = inlined_call_operand.vmem [shape: s32[768,1], index: 6, kind: input, shape index: {}]
  %s7 = inlined_call_operand.vmem [shape: f32[128,128], index: 7, kind: input, shape index: {}]
  %s8 = inlined_call_operand.vmem [shape: f32[128,128], index: 8, kind: input, shape index: {}]
  %s9 = inlined_call_operand.vmem [shape: f32[768,128], index: 9, kind: output, shape index: {0}]
  %s10 = inlined_call_operand.vmem [shape: f32[256,128], index: 10, kind: output, shape index: {1}]
  %11 = xla_tuple %s9, %s10
  %s12 = sld [smem:[#allocation0]]
  $region81: #{multi_head_attention.3} parent=0
    _
  %s14 = ssub.s32 1, %s12
  %s15 = scalar_select 0, %s14, %s12
  %s16 = sshll.u32 %s0, 4
  %s17 = int_to_ptr.vmem [resolvable:$true] %s16
  %19 = dma.vmem_to_smem %s17, 16, [#allocation5], [#allocation4]
  %20 = dma.done [#allocation4], 16
  %21 = sfence
  loop: start=0, step=1, limit=8
  $region2: #{multi_head_attention.3} parent=0 // loop_pre_header
    _
  $region3: #{multi_head_attention.3} parent=0 // loop_header
    %s23 = sphi 0, %s27
    %p24 = scmp.ge.s32.totalorder %s23, 8
    %s33 = sphi 0, %s35
    %s36 = sphi 0, %s33
    %s37 = sphi 0, %s36
    %s53 = sphi 0, %s37
    %s59 = sphi 0, %s61
    %s62 = sphi 0, %s59
    %s63 = sphi 0, %s62
    %s79 = sphi 0, %s63
    %s85 = sphi 0, %s87
    %s88 = sphi 0, %s85
    %s89 = sphi 0, %s88
    %s105 = sphi 0, %s89
    %s111 = sphi 0, %s113
    %s114 = sphi 0, %s111
    %s115 = sphi 0, %s114
    %s131 = sphi 0, %s115
    %s137 = sphi 0, %s139
    %s140 = sphi 0, %s137
    %s141 = sphi 0, %s140
    %s157 = sphi 0, %s141
    %s163 = sphi 0, %s165
    %s166 = sphi 0, %s163
    %s167 = sphi 0, %s166
    %s183 = sphi 0, %s167
    %s187 = sphi 0, %s187
    %s189 = sphi 0, %s187
    %s190 = sphi 0, %s189
    %s204 = sphi 0, %s190
    %s208 = sphi 0, %s208
    %s210 = sphi 0, %s208
    %s211 = sphi 0, %s210
    %s225 = sphi 0, %s211
    %s231 = sphi 0, %s233
    %s234 = sphi 0, %s231
    %s235 = sphi 0, %s234
    %s251 = sphi 0, %s235
    %s259 = sphi 0, %s261
    %s262 = sphi 0, %s259
    %s263 = sphi 0, %s262
    %s279 = sphi 0, %s263
  $region4: #{multi_head_attention.3} parent=0 // loop_header_branch
    %26 = sbr.rel (%p24) target = $region8
  $region5: #{multi_head_attention.3} parent=0 // loop_body
    %s28 = ssub.s32 %s23, 1
    %s29 = ssub.s32 %s23, 2
    %s30 = sadd.s32 %s23, 1
    %s31 = ssub.s32 %s23, %s30
    %p32 = scmp.eq.s32.totalorder %s31, 0
    %s34 = sadd.s32 %s33, 1
    %s35 = scalar_select %p32, %s33, %s34
    %p38 = pneg %p32
    %p39 = scmp.eq.s32.totalorder %s23, 5
    %p40 = por %p38, %p39
    %p41 = scmp.ne.s32.totalorder %s33, %s36
    %p42 = scmp.eq.s32.totalorder %s23, 0
    %p43 = por %p41, %p42
    %p44 = scmp.ne.s32.totalorder %s33, %s36
    %p45 = scmp.eq.s32.totalorder %s28, 5
    %p46 = por %p44, %p45
    %p47 = scmp.ne.s32.totalorder %s36, %s37
    %p48 = scmp.eq.s32.totalorder %s28, 0
    %p49 = por %p47, %p48
    %p50 = scmp.ne.s32.totalorder %s36, %s37
    %p51 = scmp.eq.s32.totalorder %s29, 5
    %p52 = por %p50, %p51
    %p54 = scmp.ne.s32.totalorder %s37, %s53
    %p55 = scmp.eq.s32.totalorder %s29, 0
    %p56 = por %p54, %p55
    %s57 = ssub.s32 %s23, %s30
    %p58 = scmp.eq.s32.totalorder %s57, 0
    %s60 = sadd.s32 %s59, 1
    %s61 = scalar_select %p58, %s59, %s60
    %p64 = pneg %p58
    %p65 = scmp.eq.s32.totalorder %s23, 5
    %p66 = por %p64, %p65
    %p67 = scmp.ne.s32.totalorder %s59, %s62
    %p68 = scmp.eq.s32.totalorder %s23, 0
    %p69 = por %p67, %p68
    %p70 = scmp.ne.s32.totalorder %s59, %s62
    %p71 = scmp.eq.s32.totalorder %s28, 5
    %p72 = por %p70, %p71
    %p73 = scmp.ne.s32.totalorder %s62, %s63
    %p74 = scmp.eq.s32.totalorder %s28, 0
    %p75 = por %p73, %p74
    %p76 = scmp.ne.s32.totalorder %s62, %s63
    %p77 = scmp.eq.s32.totalorder %s29, 5
    %p78 = por %p76, %p77
    %p80 = scmp.ne.s32.totalorder %s63, %s79
    %p81 = scmp.eq.s32.totalorder %s29, 0
    %p82 = por %p80, %p81
    %s83 = ssub.s32 %s23, %s30
    %p84 = scmp.eq.s32.totalorder %s83, 0
    %s86 = sadd.s32 %s85, 1
    %s87 = scalar_select %p84, %s85, %s86
    %p90 = pneg %p84
    %p91 = scmp.eq.s32.totalorder %s23, 5
    %p92 = por %p90, %p91
    %p93 = scmp.ne.s32.totalorder %s85, %s88
    %p94 = scmp.eq.s32.totalorder %s23, 0
    %p95 = por %p93, %p94
    %p96 = scmp.ne.s32.totalorder %s85, %s88
    %p97 = scmp.eq.s32.totalorder %s28, 5
    %p98 = por %p96, %p97
    %p99 = scmp.ne.s32.totalorder %s88, %s89
    %p100 = scmp.eq.s32.totalorder %s28, 0
    %p101 = por %p99, %p100
    %p102 = scmp.ne.s32.totalorder %s88, %s89
    %p103 = scmp.eq.s32.totalorder %s29, 5
    %p104 = por %p102, %p103
    %p106 = scmp.ne.s32.totalorder %s89, %s105
    %p107 = scmp.eq.s32.totalorder %s29, 0
    %p108 = por %p106, %p107
    %s109 = ssub.s32 %s23, %s30
    %p110 = scmp.eq.s32.totalorder %s109, 0
    %s112 = sadd.s32 %s111, 1
    %s113 = scalar_select %p110, %s111, %s112
    %p116 = pneg %p110
    %p117 = scmp.eq.s32.totalorder %s23, 5
    %p118 = por %p116, %p117
    %p119 = scmp.ne.s32.totalorder %s111, %s114
    %p120 = scmp.eq.s32.totalorder %s23, 0
    %p121 = por %p119, %p120
    %p122 = scmp.ne.s32.totalorder %s111, %s114
    %p123 = scmp.eq.s32.totalorder %s28, 5
    %p124 = por %p122, %p123
    %p125 = scmp.ne.s32.totalorder %s114, %s115
    %p126 = scmp.eq.s32.totalorder %s28, 0
    %p127 = por %p125, %p126
    %p128 = scmp.ne.s32.totalorder %s114, %s115
    %p129 = scmp.eq.s32.totalorder %s29, 5
    %p130 = por %p128, %p129
    %p132 = scmp.ne.s32.totalorder %s115, %s131
    %p133 = scmp.eq.s32.totalorder %s29, 0
    %p134 = por %p132, %p133
    %s135 = ssub.s32 %s23, %s30
    %p136 = scmp.eq.s32.totalorder %s135, 0
    %s138 = sadd.s32 %s137, 1
    %s139 = scalar_select %p136, %s137, %s138
    %p142 = pneg %p136
    %p143 = scmp.eq.s32.totalorder %s23, 5
    %p144 = por %p142, %p143
    %p145 = scmp.ne.s32.totalorder %s137, %s140
    %p146 = scmp.eq.s32.totalorder %s23, 0
    %p147 = por %p145, %p146
    %p148 = scmp.ne.s32.totalorder %s137, %s140
    %p149 = scmp.eq.s32.totalorder %s28, 5
    %p150 = por %p148, %p149
    %p151 = scmp.ne.s32.totalorder %s140, %s141
    %p152 = scmp.eq.s32.totalorder %s28, 0
    %p153 = por %p151, %p152
    %p154 = scmp.ne.s32.totalorder %s140, %s141
    %p155 = scmp.eq.s32.totalorder %s29, 5
    %p156 = por %p154, %p155
    %p158 = scmp.ne.s32.totalorder %s141, %s157
    %p159 = scmp.eq.s32.totalorder %s29, 0
    %p160 = por %p158, %p159
    %s161 = ssub.s32 %s23, %s30
    %p162 = scmp.eq.s32.totalorder %s161, 0
    %s164 = sadd.s32 %s163, 1
    %s165 = scalar_select %p162, %s163, %s164
    %p168 = pneg %p162
    %p169 = scmp.eq.s32.totalorder %s23, 5
    %p170 = por %p168, %p169
    %p171 = scmp.ne.s32.totalorder %s163, %s166
    %p172 = scmp.eq.s32.totalorder %s23, 0
    %p173 = por %p171, %p172
    %p174 = scmp.ne.s32.totalorder %s163, %s166
    %p175 = scmp.eq.s32.totalorder %s28, 5
    %p176 = por %p174, %p175
    %p177 = scmp.ne.s32.totalorder %s166, %s167
    %p178 = scmp.eq.s32.totalorder %s28, 0
    %p179 = por %p177, %p178
    %p180 = scmp.ne.s32.totalorder %s166, %s167
    %p181 = scmp.eq.s32.totalorder %s29, 5
    %p182 = por %p180, %p181
    %p184 = scmp.ne.s32.totalorder %s167, %s183
    %p185 = scmp.eq.s32.totalorder %s29, 0
    %p186 = por %p184, %p185
    %s188 = sadd.s32 %s187, 1
    %p191 = scmp.eq.s32.totalorder %s23, 5
    %p192 = scmp.ne.s32.totalorder %s187, %s189
    %p193 = scmp.eq.s32.totalorder %s23, 0
    %p194 = por %p192, %p193
    %p195 = scmp.ne.s32.totalorder %s187, %s189
    %p196 = scmp.eq.s32.totalorder %s28, 5
    %p197 = por %p195, %p196
    %p198 = scmp.ne.s32.totalorder %s189, %s190
    %p199 = scmp.eq.s32.totalorder %s28, 0
    %p200 = por %p198, %p199
    %p201 = scmp.ne.s32.totalorder %s189, %s190
    %p202 = scmp.eq.s32.totalorder %s29, 5
    %p203 = por %p201, %p202
    %p205 = scmp.ne.s32.totalorder %s190, %s204
    %p206 = scmp.eq.s32.totalorder %s29, 0
    %p207 = por %p205, %p206
    %s209 = sadd.s32 %s208, 1
    %p212 = scmp.eq.s32.totalorder %s23, 5
    %p213 = scmp.ne.s32.totalorder %s208, %s210
    %p214 = scmp.eq.s32.totalorder %s23, 0
    %p215 = por %p213, %p214
    %p216 = scmp.ne.s32.totalorder %s208, %s210
    %p217 = scmp.eq.s32.totalorder %s28, 5
    %p218 = por %p216, %p217
    %p219 = scmp.ne.s32.totalorder %s210, %s211
    %p220 = scmp.eq.s32.totalorder %s28, 0
    %p221 = por %p219, %p220
    %p222 = scmp.ne.s32.totalorder %s210, %s211
    %p223 = scmp.eq.s32.totalorder %s29, 5
    %p224 = por %p222, %p223
    %p226 = scmp.ne.s32.totalorder %s211, %s225
    %p227 = scmp.eq.s32.totalorder %s29, 0
    %p228 = por %p226, %p227
    %s229 = ssub.s32 %s23, %s30
    %p230 = scmp.eq.s32.totalorder %s229, 0
    %s232 = sadd.s32 %s231, 1
    %s233 = scalar_select %p230, %s231, %s232
    %p236 = pneg %p230
    %p237 = scmp.eq.s32.totalorder %s23, 5
    %p238 = por %p236, %p237
    %p239 = scmp.ne.s32.totalorder %s231, %s234
    %p240 = scmp.eq.s32.totalorder %s23, 0
    %p241 = por %p239, %p240
    %p242 = scmp.ne.s32.totalorder %s231, %s234
    %p243 = scmp.eq.s32.totalorder %s28, 5
    %p244 = por %p242, %p243
    %p245 = scmp.ne.s32.totalorder %s234, %s235
    %p246 = scmp.eq.s32.totalorder %s28, 0
    %p247 = por %p245, %p246
    %p248 = scmp.ne.s32.totalorder %s234, %s235
    %p249 = scmp.eq.s32.totalorder %s29, 5
    %p250 = por %p248, %p249
    %p252 = scmp.ne.s32.totalorder %s235, %s251
    %p253 = scmp.eq.s32.totalorder %s29, 0
    %p254 = por %p252, %p253
    %s255 = sld [smem:[#allocation5 + %s23]]
    %s256 = sld [smem:[#allocation5 + %s30]]
    %s257 = ssub.s32 %s255, %s256
    %p258 = scmp.eq.s32.totalorder %s257, 0
    %s260 = sadd.s32 %s259, 1
    %s261 = scalar_select %p258, %s259, %s260
    %p264 = pneg %p258
    %p265 = scmp.eq.s32.totalorder %s23, 5
    %p266 = por %p264, %p265
    %p267 = scmp.ne.s32.totalorder %s259, %s262
    %p268 = scmp.eq.s32.totalorder %s23, 0
    %p269 = por %p267, %p268
    %p270 = scmp.ne.s32.totalorder %s259, %s262
    %p271 = scmp.eq.s32.totalorder %s28, 5
    %p272 = por %p270, %p271
    %p273 = scmp.ne.s32.totalorder %s262, %s263
    %p274 = scmp.eq.s32.totalorder %s28, 0
    %p275 = por %p273, %p274
    %p276 = scmp.ne.s32.totalorder %s262, %s263
    %p277 = scmp.eq.s32.totalorder %s29, 5
    %p278 = por %p276, %p277
    %p280 = scmp.ne.s32.totalorder %s263, %s279
    %p281 = scmp.eq.s32.totalorder %s29, 0
    %p282 = por %p280, %p281
    %p283 = scmp.le.s32.totalorder 1, %s23
    %p284 = scmp.lt.s32.totalorder %s23, 7
    %p285 = pnand %p283, %p284
    %p286 = pneg %p285
    // Predicated region
    $region9: #{multi_head_attention.3} parent=5 // pred_check
      _
    $region10: #{multi_head_attention.3} parent=5 // pred_check_branch
      %288 = sbr.rel (%p285) target = $region12
    $region11: #{multi_head_attention.3} parent=5 // pred_region
      %s289 = ssub.s32 %s23, 1
      // Predicated region
      $region13: #{multi_head_attention.3} parent=11 // pred_check
        %p290 = pneg %p200
      $region14: #{multi_head_attention.3} parent=11 // pred_check_branch
        %292 = sbr.rel (%p290) target = $region16
      $region15: #{multi_head_attention.3} parent=11 // pred_region
        _
      $region16: #{multi_head_attention.3} parent=11 // pred_fallthru
        _
      // Predicated region
      $region17: #{multi_head_attention.3} parent=11 // pred_check
        %p293 = pneg %p221
      $region18: #{multi_head_attention.3} parent=11 // pred_check_branch
        %295 = sbr.rel (%p293) target = $region20
      $region19: #{multi_head_attention.3} parent=11 // pred_region
        _
      $region20: #{multi_head_attention.3} parent=11 // pred_fallthru
        _
    $region12: #{multi_head_attention.3} parent=5 // pred_fallthru
      _
    %p296 = scmp.lt.s32.totalorder %s23, 6
    // Predicated region
    $region21: #{multi_head_attention.3} parent=5 // pred_check
      %p297 = pneg %p296
    $region22: #{multi_head_attention.3} parent=5 // pred_check_branch
      %299 = sbr.rel (%p297) target = $region24
    $region23: #{multi_head_attention.3} parent=5 // pred_region
      // Predicated region
      $region25: #{multi_head_attention.3} parent=23 // pred_check
        %p300 = pneg %p43
      $region26: #{multi_head_attention.3} parent=23 // pred_check_branch
        %302 = sbr.rel (%p300) target = $region28
      $region27: #{multi_head_attention.3} parent=23 // pred_region
        %s303 = smul.u32 16, %s23
        %p304 = scmp.lt.s32.totalorder %s303, 95
        %s305 = scalar_select %p304, %s303, 95
        %s306 = smul.addr %s305, 8
        %s307 = scalar_lea.vmem %s1, %s306
        %s308 = smul.u32 16, %s23
      $region28: #{multi_head_attention.3} parent=23 // pred_fallthru
        _
      // Predicated region
      $region29: #{multi_head_attention.3} parent=23 // pred_check
        %p309 = pneg %p69
      $region30: #{multi_head_attention.3} parent=23 // pred_check_branch
        %311 = sbr.rel (%p309) target = $region32
      $region31: #{multi_head_attention.3} parent=23 // pred_region
        %s312 = smul.u32 16, %s23
        %p313 = scmp.lt.s32.totalorder %s312, 95
        %s314 = scalar_select %p313, %s312, 95
        %s315 = smul.addr %s314, 8
        %s316 = scalar_lea.vmem %s2, %s315
        %s317 = smul.u32 16, %s23
      $region32: #{multi_head_attention.3} parent=23 // pred_fallthru
        _
      // Predicated region
      $region33: #{multi_head_attention.3} parent=23 // pred_check
        %p318 = pneg %p95
      $region34: #{multi_head_attention.3} parent=23 // pred_check_branch
        %320 = sbr.rel (%p318) target = $region36
      $region35: #{multi_head_attention.3} parent=23 // pred_region
        %s321 = smul.u32 16, %s23
        %p322 = scmp.lt.s32.totalorder %s321, 95
        %s323 = scalar_select %p322, %s321, 95
        %s324 = smul.addr %s323, 8
        %s325 = scalar_lea.vmem %s3, %s324
        %s326 = smul.u32 16, %s23
      $region36: #{multi_head_attention.3} parent=23 // pred_fallthru
        _
      // Predicated region
      $region37: #{multi_head_attention.3} parent=23 // pred_check
        %p327 = pneg %p121
      $region38: #{multi_head_attention.3} parent=23 // pred_check_branch
        %329 = sbr.rel (%p327) target = $region40
      $region39: #{multi_head_attention.3} parent=23 // pred_region
        %s330 = smul.u32 16, %s23
        %p331 = scmp.lt.s32.totalorder %s330, 95
        %s332 = scalar_select %p331, %s330, 95
        %s333 = smul.addr %s332, 8
        %s334 = scalar_lea.vmem %s4, %s333
        %s335 = smul.u32 16, %s23
      $region40: #{multi_head_attention.3} parent=23 // pred_fallthru
        _
      // Predicated region
      $region41: #{multi_head_attention.3} parent=23 // pred_check
        %p336 = pneg %p147
      $region42: #{multi_head_attention.3} parent=23 // pred_check_branch
        %338 = sbr.rel (%p336) target = $region44
      $region43: #{multi_head_attention.3} parent=23 // pred_region
        %s339 = smul.u32 16, %s23
        %p340 = scmp.lt.s32.totalorder %s339, 95
        %s341 = scalar_select %p340, %s339, 95
        %s342 = smul.addr %s341, 8
        %s343 = scalar_lea.vmem %s5, %s342
        %s344 = smul.u32 16, %s23
      $region44: #{multi_head_attention.3} parent=23 // pred_fallthru
        _
      // Predicated region
      $region45: #{multi_head_attention.3} parent=23 // pred_check
        %p345 = pneg %p173
      $region46: #{multi_head_attention.3} parent=23 // pred_check_branch
        %347 = sbr.rel (%p345) target = $region48
      $region47: #{multi_head_attention.3} parent=23 // pred_region
        %s348 = smul.u32 16, %s23
        %p349 = scmp.lt.s32.totalorder %s348, 95
        %s350 = scalar_select %p349, %s348, 95
        %s351 = smul.addr %s350, 8
        %s352 = scalar_lea.vmem %s6, %s351
        %s353 = smul.u32 16, %s23
      $region48: #{multi_head_attention.3} parent=23 // pred_fallthru
        _
    $region24: #{multi_head_attention.3} parent=5 // pred_fallthru
      _
    %p354 = scmp.le.s32.totalorder 1, %s23
    %p355 = scmp.lt.s32.totalorder %s23, 7
    %p356 = pnand %p354, %p355
    %p357 = pneg %p356
    // Predicated region
    $region49: #{multi_head_attention.3} parent=5 // pred_check
      _
    $region50: #{multi_head_attention.3} parent=5 // pred_check_branch
      %359 = sbr.rel (%p356) target = $region52
    $region51: #{multi_head_attention.3} parent=5 // pred_region
      %s360 = ssub.s32 %s23, 1
      %s361 = smul.u32 16, %s28
      %p362 = scmp.lt.s32.totalorder %s361, 95
      %s363 = scalar_select %p362, %s361, 95
      %s364 = smul.addr %s363, 8
      %s365 = scalar_lea.vmem %s1, %s364
      %p366 = pneg %p49
      %p367 = pneg %p46
      %s368 = smul.u32 16, %s28
      %p369 = scmp.lt.s32.totalorder %s368, 95
      %s370 = scalar_select %p369, %s368, 95
      %s371 = smul.addr %s370, 8
      %s372 = scalar_lea.vmem %s2, %s371
      %p373 = pneg %p75
      %p374 = pneg %p72
      %s375 = smul.u32 16, %s28
      %p376 = scmp.lt.s32.totalorder %s375, 95
      %s377 = scalar_select %p376, %s375, 95
      %s378 = smul.addr %s377, 8
      %s379 = scalar_lea.vmem %s3, %s378
      %p380 = pneg %p101
      %p381 = pneg %p98
      %s382 = smul.u32 16, %s28
      %p383 = scmp.lt.s32.totalorder %s382, 95
      %s384 = scalar_select %p383, %s382, 95
      %s385 = smul.addr %s384, 8
      %s386 = scalar_lea.vmem %s4, %s385
      %p387 = pneg %p127
      %p388 = pneg %p124
      %s389 = smul.u32 16, %s28
      %p390 = scmp.lt.s32.totalorder %s389, 95
      %s391 = scalar_select %p390, %s389, 95
      %s392 = smul.addr %s391, 8
      %s393 = scalar_lea.vmem %s5, %s392
      %p394 = pneg %p153
      %p395 = pneg %p150
      %s396 = smul.u32 16, %s28
      %p397 = scmp.lt.s32.totalorder %s396, 95
      %s398 = scalar_select %p397, %s396, 95
      %s399 = smul.addr %s398, 8
      %s400 = scalar_lea.vmem %s6, %s399
      %p401 = pneg %p179
      %p402 = pneg %p176
      %p403 = pneg %p200
      %p404 = pneg %p197
      %p405 = pneg %p221
      %p406 = pneg %p218
      %p407 = pneg %p247
      %p408 = pneg %p244
      %s409 = smul.u32 16, %s28
      %p410 = scmp.lt.s32.totalorder %s409, 95
      %s411 = scalar_select %p410, %s409, 95
      %s412 = smul.addr %s411, 8
      %s413 = scalar_lea.vmem %s9, %s412
      %p414 = pneg %p275
      %p415 = pneg %p272
      %s416 = sld [smem:[#allocation5 + %s28]]
      %s417 = smul.u32 16, %s416
      %p418 = scmp.lt.s32.totalorder %s417, 31
      %s419 = scalar_select %p418, %s417, 31
      %s420 = smul.addr %s419, 8
      %s421 = scalar_lea.vmem %s10, %s420
      %s422 = smul.u32 16, %s28
      %p423 = scmp.lt.s32.totalorder %s422, 95
      %s424 = scalar_select %p423, %s422, 95
      %s425 = smul.addr %s424, 8
      %s426 = scalar_lea.vmem %s1, %s425
      %s427 = smul.u32 16, %s28
      %s428 = smul.u32 16, %s28
      %p429 = scmp.lt.s32.totalorder %s428, 95
      %s430 = scalar_select %p429, %s428, 95
      %s431 = smul.addr %s430, 8
      %s432 = scalar_lea.vmem %s2, %s431
      %s433 = smul.u32 16, %s28
      %s434 = smul.u32 16, %s28
      %p435 = scmp.lt.s32.totalorder %s434, 95
      %s436 = scalar_select %p435, %s434, 95
      %s437 = smul.addr %s436, 8
      %s438 = scalar_lea.vmem %s3, %s437
      %s439 = smul.u32 16, %s28
      %s440 = smul.u32 16, %s28
      %p441 = scmp.lt.s32.totalorder %s440, 95
      %s442 = scalar_select %p441, %s440, 95
      %s443 = smul.addr %s442, 8
      %s444 = scalar_lea.vmem %s4, %s443
      %s445 = smul.u32 16, %s28
      %s446 = smul.u32 16, %s28
      %p447 = scmp.lt.s32.totalorder %s446, 95
      %s448 = scalar_select %p447, %s446, 95
      %s449 = smul.addr %s448, 8
      %s450 = scalar_lea.vmem %s5, %s449
      %s451 = smul.u32 16, %s28
      %s452 = smul.u32 16, %s28
      %p453 = scmp.lt.s32.totalorder %s452, 95
      %s454 = scalar_select %p453, %s452, 95
      %s455 = smul.addr %s454, 8
      %s456 = scalar_lea.vmem %s6, %s455
      %s457 = smul.u32 16, %s28
      %s458 = smul.u32 16, %s28
      %p459 = scmp.lt.s32.totalorder %s458, 95
      %s460 = scalar_select %p459, %s458, 95
      %s461 = smul.addr %s460, 8
      %s462 = scalar_lea.vmem %s9, %s461
      %s463 = smul.u32 16, %s28
      %s464 = sld [smem:[#allocation5 + %s28]]
      %s465 = smul.u32 16, %s464
      %p466 = scmp.lt.s32.totalorder %s465, 31
      %s467 = scalar_select %p466, %s465, 31
      %s468 = smul.addr %s467, 8
      %s469 = scalar_lea.vmem %s10, %s468
      %s470 = sld [smem:[#allocation5 + %s28]]
      %s471 = smul.u32 16, %s470
      %s472 = sld [smem:[#allocation5 + %s28]]
      %s473 = ssub.s32 %s28, 1
      %p474 = scmp.gt.s32.totalorder %s473, 0
      %s475 = scalar_select %p474, %s473, 0
      %s476 = sld [smem:[#allocation5 + %s475]]
      %s477 = sadd.s32 %s28, 1
      %p478 = scmp.lt.s32.totalorder %s477, 5
      %s479 = scalar_select %p478, %s477, 5
      %s480 = sld [smem:[#allocation5 + %s479]]
      %p481 = scmp.eq.s32.totalorder %s28, 0
      %p482 = scmp.ne.s32.totalorder %s476, %s472
      %p483 = por %p481, %p482
      %p484 = scmp.eq.s32.totalorder %s28, 5
      %p485 = scmp.ne.s32.totalorder %s480, %s472
      %p486 = por %p484, %p485
      // Predicated region
      $region53: #{multi_head_attention.3} parent=51 // pred_check
        %p487 = pneg %p483
      $region54: #{multi_head_attention.3} parent=51 // pred_check_branch
        %489 = sbr.rel (%p487) target = $region56
      $region55: #{multi_head_attention.3} parent=51 // pred_region
        %490 = vst [vmem:[#allocation2] sm:$0xff] 0.0
        %491 = vst [vmem:[#allocation2 + $0x8] sm:$0xff] 0.0
        %492 = vst [vmem:[#allocation2 + $0x10] sm:$0xff] 0.0
        %493 = vst [vmem:[#allocation2 + $0x18] sm:$0xff] 0.0
        %494 = vst [vmem:[#allocation2 + $0x20] sm:$0xff] 0.0
        %495 = vst [vmem:[#allocation2 + $0x28] sm:$0xff] 0.0
        %496 = vst [vmem:[#allocation2 + $0x30] sm:$0xff] 0.0
        %497 = vst [vmem:[#allocation2 + $0x38] sm:$0xff] 0.0
        %498 = vst [vmem:[#allocation2 + $0x40] sm:$0xff] 0.0
        %499 = vst [vmem:[#allocation2 + $0x48] sm:$0xff] 0.0
        %500 = vst [vmem:[#allocation2 + $0x50] sm:$0xff] 0.0
        %501 = vst [vmem:[#allocation2 + $0x58] sm:$0xff] 0.0
        %502 = vst [vmem:[#allocation2 + $0x60] sm:$0xff] 0.0
        %503 = vst [vmem:[#allocation2 + $0x68] sm:$0xff] 0.0
        %504 = vst [vmem:[#allocation2 + $0x70] sm:$0xff] 0.0
        %505 = vst [vmem:[#allocation2 + $0x78] sm:$0xff] 0.0
        %506 = vst [vmem:[#allocation3] sm:$0xff] 0.0
        %507 = vst [vmem:[#allocation3 + $0x8] sm:$0xff] 0.0
        %508 = vst [vmem:[#allocation3 + $0x10] sm:$0xff] 0.0
        %509 = vst [vmem:[#allocation3 + $0x18] sm:$0xff] 0.0
        %510 = vst [vmem:[#allocation3 + $0x20] sm:$0xff] 0.0
        %511 = vst [vmem:[#allocation3 + $0x28] sm:$0xff] 0.0
        %512 = vst [vmem:[#allocation3 + $0x30] sm:$0xff] 0.0
        %513 = vst [vmem:[#allocation3 + $0x38] sm:$0xff] 0.0
        %514 = vst [vmem:[#allocation3 + $0x40] sm:$0xff] 0.0
        %515 = vst [vmem:[#allocation3 + $0x48] sm:$0xff] 0.0
        %516 = vst [vmem:[#allocation3 + $0x50] sm:$0xff] 0.0
        %517 = vst [vmem:[#allocation3 + $0x58] sm:$0xff] 0.0
        %518 = vst [vmem:[#allocation3 + $0x60] sm:$0xff] 0.0
        %519 = vst [vmem:[#allocation3 + $0x68] sm:$0xff] 0.0
        %520 = vst [vmem:[#allocation3 + $0x70] sm:$0xff] 0.0
        %521 = vst [vmem:[#allocation3 + $0x78] sm:$0xff] 0.0
      $region56: #{multi_head_attention.3} parent=51 // pred_fallthru
        _
      %v522 = vld [vmem:[%s444] sm:$0xff]
      %v523 = vld [vmem:[%s444 + $0x8] sm:$0xff]
      %v524 = vld [vmem:[%s444 + $0x10] sm:$0xff]
      %v525 = vld [vmem:[%s444 + $0x18] sm:$0xff]
      %v526 = vld [vmem:[%s444 + $0x20] sm:$0xff]
      %v527 = vld [vmem:[%s444 + $0x28] sm:$0xff]
      %v528 = vld [vmem:[%s444 + $0x30] sm:$0xff]
      %v529 = vld [vmem:[%s444 + $0x38] sm:$0xff]
      %v530 = vld [vmem:[%s444 + $0x40] sm:$0xff]
      %v531 = vld [vmem:[%s444 + $0x48] sm:$0xff]
      %v532 = vld [vmem:[%s444 + $0x50] sm:$0xff]
      %v533 = vld [vmem:[%s444 + $0x58] sm:$0xff]
      %v534 = vld [vmem:[%s444 + $0x60] sm:$0xff]
      %v535 = vld [vmem:[%s444 + $0x68] sm:$0xff]
      %v536 = vld [vmem:[%s444 + $0x70] sm:$0xff]
      %v537 = vld [vmem:[%s444 + $0x78] sm:$0xff]
      %v538 = vld [vmem:[%s7] sm:$0xff]
      %v539 = vld [vmem:[%s7 + $0x8] sm:$0xff]
      %v540 = vld [vmem:[%s7 + $0x10] sm:$0xff]
      %v541 = vld [vmem:[%s7 + $0x18] sm:$0xff]
      %v542 = vld [vmem:[%s7 + $0x20] sm:$0xff]
      %v543 = vld [vmem:[%s7 + $0x28] sm:$0xff]
      %v544 = vld [vmem:[%s7 + $0x30] sm:$0xff]
      %v545 = vld [vmem:[%s7 + $0x38] sm:$0xff]
      %v546 = vld [vmem:[%s7 + $0x40] sm:$0xff]
      %v547 = vld [vmem:[%s7 + $0x48] sm:$0xff]
      %v548 = vld [vmem:[%s7 + $0x50] sm:$0xff]
      %v549 = vld [vmem:[%s7 + $0x58] sm:$0xff]
      %v550 = vld [vmem:[%s7 + $0x60] sm:$0xff]
      %v551 = vld [vmem:[%s7 + $0x68] sm:$0xff]
      %v552 = vld [vmem:[%s7 + $0x70] sm:$0xff]
      %v553 = vld [vmem:[%s7 + $0x78] sm:$0xff]
      %554 = vmatprep.subr.mxu0 0.0
      %555 = vmatpush1.msra.mxu0 %v553
      %556 = vmatprep.subr.mxu0 0.0
      %557 = vmatpush1.msra.mxu0 %v552
      %558 = vmatprep.subr.mxu0 0.0
      %559 = vmatpush1.msra.mxu0 %v551
      %560 = vmatprep.subr.mxu0 0.0
      %561 = vmatpush1.msra.mxu0 %v550
      %562 = vmatprep.subr.mxu0 0.0
      %563 = vmatpush1.msra.mxu0 %v549
      %564 = vmatprep.subr.mxu0 0.0
      %565 = vmatpush1.msra.mxu0 %v548
      %566 = vmatprep.subr.mxu0 0.0
      %567 = vmatpush1.msra.mxu0 %v547
      %568 = vmatprep.subr.mxu0 0.0
      %569 = vmatpush1.msra.mxu0 %v546
      %570 = vmatprep.subr.mxu0 0.0
      %571 = vmatpush1.msra.mxu0 %v545
      %572 = vmatprep.subr.mxu0 0.0
      %573 = vmatpush1.msra.mxu0 %v544
      %574 = vmatprep.subr.mxu0 0.0
      %575 = vmatpush1.msra.mxu0 %v543
      %576 = vmatprep.subr.mxu0 0.0
      %577 = vmatpush1.msra.mxu0 %v542
      %578 = vmatprep.subr.mxu0 0.0
      %579 = vmatpush1.msra.mxu0 %v541
      %580 = vmatprep.subr.mxu0 0.0
      %581 = vmatpush1.msra.mxu0 %v540
      %582 = vmatprep.subr.mxu0 0.0
      %583 = vmatpush1.msra.mxu0 %v539
      %584 = vmatprep.subr.mxu0 0.0
      %585 = vmatpush1.msra.mxu0 %v538
      %586 = vmatprep.subr.mxu0 0.0
      %587 = vmatpush2.msra.mxu0 0.0
      %588 = vmatprep.subr.mxu0 0.0
      %589 = vmatpush2.msra.mxu0 0.0
      %590 = vmatprep.subr.mxu0 0.0
      %591 = vmatpush2.msra.mxu0 0.0
      %592 = vmatprep.subr.mxu0 0.0
      %593 = vmatpush2.msra.mxu0 0.0
      %594 = vmatprep.subr.mxu0 0.0
      %595 = vmatpush2.msra.mxu0 0.0
      %596 = vmatprep.subr.mxu0 0.0
      %597 = vmatpush2.msra.mxu0 0.0
      %598 = vmatprep.subr.mxu0 0.0
      %599 = vmatpush2.msra.mxu0 0.0
      %600 = vmatprep.subr.mxu0 0.0
      %601 = vmatpush2.msra.mxu0 0.0
      %602 = vmatprep.subr.mxu0 0.0
      %603 = vmatpush2.msra.mxu0 0.0
      %604 = vmatprep.subr.mxu0 0.0
      %605 = vmatpush2.msra.mxu0 0.0
      %606 = vmatprep.subr.mxu0 0.0
      %607 = vmatpush2.msra.mxu0 0.0
      %608 = vmatprep.subr.mxu0 0.0
      %609 = vmatpush2.msra.mxu0 0.0
      %610 = vmatprep.subr.mxu0 0.0
      %611 = vmatpush2.msra.mxu0 0.0
      %612 = vmatprep.subr.mxu0 0.0
      %613 = vmatpush2.msra.mxu0 0.0
      %614 = vmatprep.subr.mxu0 0.0
      %615 = vmatpush2.msra.mxu0 0.0
      %616 = vmatprep.subr.mxu0 0.0
      %617 = vmatpush2.msra.mxu0 0.0
      %618 = vmatprep.mubr.f32.mxu0 0.0
      %619 = vmatmul.mubr.f32.gmra.mxu0 %v522
      %v620 = vpop.f32.mrf.mxu0
      %v621 = vadd.f32 0.0, %v620
      %v622 = vpop.f32.mrf.mxu0
      %623 = vmatprep.mubr.f32.mxu0 0.0
      %624 = vmatmul.mubr.f32.gmra.mxu0 %v523
      %v625 = vpop.f32.mrf.mxu0
      %v626 = vadd.f32 0.0, %v625
      %v627 = vpop.f32.mrf.mxu0
      %628 = vmatprep.mubr.f32.mxu0 0.0
      %629 = vmatmul.mubr.f32.gmra.mxu0 %v524
      %v630 = vpop.f32.mrf.mxu0
      %v631 = vadd.f32 0.0, %v630
      %v632 = vpop.f32.mrf.mxu0
      %633 = vmatprep.mubr.f32.mxu0 0.0
      %634 = vmatmul.mubr.f32.gmra.mxu0 %v525
      %v635 = vpop.f32.mrf.mxu0
      %v636 = vadd.f32 0.0, %v635
      %v637 = vpop.f32.mrf.mxu0
      %638 = vmatprep.mubr.f32.mxu0 0.0
      %639 = vmatmul.mubr.f32.gmra.mxu0 %v526
      %v640 = vpop.f32.mrf.mxu0
      %v641 = vadd.f32 0.0, %v640
      %v642 = vpop.f32.mrf.mxu0
      %643 = vmatprep.mubr.f32.mxu0 0.0
      %644 = vmatmul.mubr.f32.gmra.mxu0 %v527
      %v645 = vpop.f32.mrf.mxu0
      %v646 = vadd.f32 0.0, %v645
      %v647 = vpop.f32.mrf.mxu0
      %648 = vmatprep.mubr.f32.mxu0 0.0
      %649 = vmatmul.mubr.f32.gmra.mxu0 %v528
      %v650 = vpop.f32.mrf.mxu0
      %v651 = vadd.f32 0.0, %v650
      %v652 = vpop.f32.mrf.mxu0
      %653 = vmatprep.mubr.f32.mxu0 0.0
      %654 = vmatmul.mubr.f32.gmra.mxu0 %v529
      %v655 = vpop.f32.mrf.mxu0
      %v656 = vadd.f32 0.0, %v655
      %v657 = vpop.f32.mrf.mxu0
      %658 = vmatprep.mubr.f32.mxu0 0.0
      %659 = vmatmul.mubr.f32.gmra.mxu0 %v530
      %v660 = vpop.f32.mrf.mxu0
      %v661 = vadd.f32 0.0, %v660
      %v662 = vpop.f32.mrf.mxu0
      %663 = vmatprep.mubr.f32.mxu0 0.0
      %664 = vmatmul.mubr.f32.gmra.mxu0 %v531
      %v665 = vpop.f32.mrf.mxu0
      %v666 = vadd.f32 0.0, %v665
      %v667 = vpop.f32.mrf.mxu0
      %668 = vmatprep.mubr.f32.mxu0 0.0
      %669 = vmatmul.mubr.f32.gmra.mxu0 %v532
      %v670 = vpop.f32.mrf.mxu0
      %v671 = vadd.f32 0.0, %v670
      %v672 = vpop.f32.mrf.mxu0
      %673 = vmatprep.mubr.f32.mxu0 0.0
      %674 = vmatmul.mubr.f32.gmra.mxu0 %v533
      %v675 = vpop.f32.mrf.mxu0
      %v676 = vadd.f32 0.0, %v675
      %v677 = vpop.f32.mrf.mxu0
      %678 = vmatprep.mubr.f32.mxu0 0.0
      %679 = vmatmul.mubr.f32.gmra.mxu0 %v534
      %v680 = vpop.f32.mrf.mxu0
      %v681 = vadd.f32 0.0, %v680
      %v682 = vpop.f32.mrf.mxu0
      %683 = vmatprep.mubr.f32.mxu0 0.0
      %684 = vmatmul.mubr.f32.gmra.mxu0 %v535
      %v685 = vpop.f32.mrf.mxu0
      %v686 = vadd.f32 0.0, %v685
      %v687 = vpop.f32.mrf.mxu0
      %688 = vmatprep.mubr.f32.mxu0 0.0
      %689 = vmatmul.mubr.f32.gmra.mxu0 %v536
      %v690 = vpop.f32.mrf.mxu0
      %v691 = vadd.f32 0.0, %v690
      %v692 = vpop.f32.mrf.mxu0
      %693 = vmatprep.mubr.f32.mxu0 0.0
      %694 = vmatmul.mubr.f32.gmra.mxu0 %v537
      %v695 = vpop.f32.mrf.mxu0
      %v696 = vadd.f32 0.0, %v695
      %v697 = vpop.f32.mrf.mxu0
      %698 = vdwg.mxu0
      %v699 = vld [vmem:[%s426] sm:$0xff]
      %v700 = vld [vmem:[%s426 + $0x8] sm:$0xff]
      %v701 = vld [vmem:[%s426 + $0x10] sm:$0xff]
      %v702 = vld [vmem:[%s426 + $0x18] sm:$0xff]
      %v703 = vld [vmem:[%s426 + $0x20] sm:$0xff]
      %v704 = vld [vmem:[%s426 + $0x28] sm:$0xff]
      %v705 = vld [vmem:[%s426 + $0x30] sm:$0xff]
      %v706 = vld [vmem:[%s426 + $0x38] sm:$0xff]
      %v707 = vld [vmem:[%s426 + $0x40] sm:$0xff]
      %v708 = vld [vmem:[%s426 + $0x48] sm:$0xff]
      %v709 = vld [vmem:[%s426 + $0x50] sm:$0xff]
      %v710 = vld [vmem:[%s426 + $0x58] sm:$0xff]
      %v711 = vld [vmem:[%s426 + $0x60] sm:$0xff]
      %v712 = vld [vmem:[%s426 + $0x68] sm:$0xff]
      %v713 = vld [vmem:[%s426 + $0x70] sm:$0xff]
      %v714 = vld [vmem:[%s426 + $0x78] sm:$0xff]
      %v715 = vld [vmem:[%s432] sm:$0xff]
      %v716 = vld [vmem:[%s432 + $0x8] sm:$0xff]
      %v717 = vld [vmem:[%s432 + $0x10] sm:$0xff]
      %v718 = vld [vmem:[%s432 + $0x18] sm:$0xff]
      %v719 = vld [vmem:[%s432 + $0x20] sm:$0xff]
      %v720 = vld [vmem:[%s432 + $0x28] sm:$0xff]
      %v721 = vld [vmem:[%s432 + $0x30] sm:$0xff]
      %v722 = vld [vmem:[%s432 + $0x38] sm:$0xff]
      %v723 = vld [vmem:[%s432 + $0x40] sm:$0xff]
      %v724 = vld [vmem:[%s432 + $0x48] sm:$0xff]
      %v725 = vld [vmem:[%s432 + $0x50] sm:$0xff]
      %v726 = vld [vmem:[%s432 + $0x58] sm:$0xff]
      %v727 = vld [vmem:[%s432 + $0x60] sm:$0xff]
      %v728 = vld [vmem:[%s432 + $0x68] sm:$0xff]
      %v729 = vld [vmem:[%s432 + $0x70] sm:$0xff]
      %v730 = vld [vmem:[%s432 + $0x78] sm:$0xff]
      %v731 = vmul.f32 %v699, %v715
      %v732 = vmul.f32 %v700, %v716
      %v733 = vmul.f32 %v701, %v717
      %v734 = vmul.f32 %v702, %v718
      %v735 = vmul.f32 %v703, %v719
      %v736 = vmul.f32 %v704, %v720
      %v737 = vmul.f32 %v705, %v721
      %v738 = vmul.f32 %v706, %v722
      %v739 = vmul.f32 %v707, %v723
      %v740 = vmul.f32 %v708, %v724
      %v741 = vmul.f32 %v709, %v725
      %v742 = vmul.f32 %v710, %v726
      %v743 = vmul.f32 %v711, %v727
      %v744 = vmul.f32 %v712, %v728
      %v745 = vmul.f32 %v713, %v729
      %v746 = vmul.f32 %v714, %v730
      %v747 = vmul.f32 %v621, 0.35355338
      %v748 = vmul.f32 %v626, 0.35355338
      %v749 = vmul.f32 %v631, 0.35355338
      %v750 = vmul.f32 %v636, 0.35355338
      %v751 = vmul.f32 %v641, 0.35355338
      %v752 = vmul.f32 %v646, 0.35355338
      %v753 = vmul.f32 %v651, 0.35355338
      %v754 = vmul.f32 %v656, 0.35355338
      %v755 = vmul.f32 %v661, 0.35355338
      %v756 = vmul.f32 %v666, 0.35355338
      %v757 = vmul.f32 %v671, 0.35355338
      %v758 = vmul.f32 %v676, 0.35355338
      %v759 = vmul.f32 %v681, 0.35355338
      %v760 = vmul.f32 %v686, 0.35355338
      %v761 = vmul.f32 %v691, 0.35355338
      %v762 = vmul.f32 %v696, 0.35355338
      %v763 = vmul.f32 %v731, %v747
      %v764 = vmul.f32 %v732, %v748
      %v765 = vmul.f32 %v733, %v749
      %v766 = vmul.f32 %v734, %v750
      %v767 = vmul.f32 %v735, %v751
      %v768 = vmul.f32 %v736, %v752
      %v769 = vmul.f32 %v737, %v753
      %v770 = vmul.f32 %v738, %v754
      %v771 = vmul.f32 %v739, %v755
      %v772 = vmul.f32 %v740, %v756
      %v773 = vmul.f32 %v741, %v757
      %v774 = vmul.f32 %v742, %v758
      %v775 = vmul.f32 %v743, %v759
      %v776 = vmul.f32 %v744, %v760
      %v777 = vmul.f32 %v745, %v761
      %v778 = vmul.f32 %v746, %v762
      %779 = vst [vmem:[%s462] sm:$0xff] %v763
      %780 = vst [vmem:[%s462 + $0x8] sm:$0xff] %v764
      %781 = vst [vmem:[%s462 + $0x10] sm:$0xff] %v765
      %782 = vst [vmem:[%s462 + $0x18] sm:$0xff] %v766
      %783 = vst [vmem:[%s462 + $0x20] sm:$0xff] %v767
      %784 = vst [vmem:[%s462 + $0x28] sm:$0xff] %v768
      %785 = vst [vmem:[%s462 + $0x30] sm:$0xff] %v769
      %786 = vst [vmem:[%s462 + $0x38] sm:$0xff] %v770
      %787 = vst [vmem:[%s462 + $0x40] sm:$0xff] %v771
      %788 = vst [vmem:[%s462 + $0x48] sm:$0xff] %v772
      %789 = vst [vmem:[%s462 + $0x50] sm:$0xff] %v773
      %790 = vst [vmem:[%s462 + $0x58] sm:$0xff] %v774
      %791 = vst [vmem:[%s462 + $0x60] sm:$0xff] %v775
      %792 = vst [vmem:[%s462 + $0x68] sm:$0xff] %v776
      %793 = vst [vmem:[%s462 + $0x70] sm:$0xff] %v777
      %794 = vst [vmem:[%s462 + $0x78] sm:$0xff] %v778
      %v795 = vld [vmem:[%s8] sm:$0xff]
      %v796 = vld [vmem:[%s8 + $0x8] sm:$0xff]
      %v797 = vld [vmem:[%s8 + $0x10] sm:$0xff]
      %v798 = vld [vmem:[%s8 + $0x18] sm:$0xff]
      %v799 = vld [vmem:[%s8 + $0x20] sm:$0xff]
      %v800 = vld [vmem:[%s8 + $0x28] sm:$0xff]
      %v801 = vld [vmem:[%s8 + $0x30] sm:$0xff]
      %v802 = vld [vmem:[%s8 + $0x38] sm:$0xff]
      %v803 = vld [vmem:[%s8 + $0x40] sm:$0xff]
      %v804 = vld [vmem:[%s8 + $0x48] sm:$0xff]
      %v805 = vld [vmem:[%s8 + $0x50] sm:$0xff]
      %v806 = vld [vmem:[%s8 + $0x58] sm:$0xff]
      %v807 = vld [vmem:[%s8 + $0x60] sm:$0xff]
      %v808 = vld [vmem:[%s8 + $0x68] sm:$0xff]
      %v809 = vld [vmem:[%s8 + $0x70] sm:$0xff]
      %v810 = vld [vmem:[%s8 + $0x78] sm:$0xff]
      %811 = vmatprep.subr.mxu0 0.0
      %812 = vmatpush1.msra.mxu0 %v810
      %813 = vmatprep.subr.mxu0 0.0
      %814 = vmatpush1.msra.mxu0 %v809
      %815 = vmatprep.subr.mxu0 0.0
      %816 = vmatpush1.msra.mxu0 %v808
      %817 = vmatprep.subr.mxu0 0.0
      %818 = vmatpush1.msra.mxu0 %v807
      %819 = vmatprep.subr.mxu0 0.0
      %820 = vmatpush1.msra.mxu0 %v806
      %821 = vmatprep.subr.mxu0 0.0
      %822 = vmatpush1.msra.mxu0 %v805
      %823 = vmatprep.subr.mxu0 0.0
      %824 = vmatpush1.msra.mxu0 %v804
      %825 = vmatprep.subr.mxu0 0.0
      %826 = vmatpush1.msra.mxu0 %v803
      %827 = vmatprep.subr.mxu0 0.0
      %828 = vmatpush1.msra.mxu0 %v802
      %829 = vmatprep.subr.mxu0 0.0
      %830 = vmatpush1.msra.mxu0 %v801
      %831 = vmatprep.subr.mxu0 0.0
      %832 = vmatpush1.msra.mxu0 %v800
      %833 = vmatprep.subr.mxu0 0.0
      %834 = vmatpush1.msra.mxu0 %v799
      %835 = vmatprep.subr.mxu0 0.0
      %836 = vmatpush1.msra.mxu0 %v798
      %837 = vmatprep.subr.mxu0 0.0
      %838 = vmatpush1.msra.mxu0 %v797
      %839 = vmatprep.subr.mxu0 0.0
      %840 = vmatpush1.msra.mxu0 %v796
      %841 = vmatprep.subr.mxu0 0.0
      %842 = vmatpush1.msra.mxu0 %v795
      %843 = vmatprep.subr.mxu0 0.0
      %844 = vmatpush2.msra.mxu0 0.0
      %845 = vmatprep.subr.mxu0 0.0
      %846 = vmatpush2.msra.mxu0 0.0
      %847 = vmatprep.subr.mxu0 0.0
      %848 = vmatpush2.msra.mxu0 0.0
      %849 = vmatprep.subr.mxu0 0.0
      %850 = vmatpush2.msra.mxu0 0.0
      %851 = vmatprep.subr.mxu0 0.0
      %852 = vmatpush2.msra.mxu0 0.0
      %853 = vmatprep.subr.mxu0 0.0
      %854 = vmatpush2.msra.mxu0 0.0
      %855 = vmatprep.subr.mxu0 0.0
      %856 = vmatpush2.msra.mxu0 0.0
      %857 = vmatprep.subr.mxu0 0.0
      %858 = vmatpush2.msra.mxu0 0.0
      %859 = vmatprep.subr.mxu0 0.0
      %860 = vmatpush2.msra.mxu0 0.0
      %861 = vmatprep.subr.mxu0 0.0
      %862 = vmatpush2.msra.mxu0 0.0
      %863 = vmatprep.subr.mxu0 0.0
      %864 = vmatpush2.msra.mxu0 0.0
      %865 = vmatprep.subr.mxu0 0.0
      %866 = vmatpush2.msra.mxu0 0.0
      %867 = vmatprep.subr.mxu0 0.0
      %868 = vmatpush2.msra.mxu0 0.0
      %869 = vmatprep.subr.mxu0 0.0
      %870 = vmatpush2.msra.mxu0 0.0
      %871 = vmatprep.subr.mxu0 0.0
      %872 = vmatpush2.msra.mxu0 0.0
      %873 = vmatprep.subr.mxu0 0.0
      %874 = vmatpush2.msra.mxu0 0.0
      %875 = vmatprep.mubr.f32.mxu0 0.0
      %876 = vmatmul.mubr.f32.gmra.mxu0 %v763
      %v877 = vpop.f32.mrf.mxu0
      %v878 = vadd.f32 0.0, %v877
      %v879 = vpop.f32.mrf.mxu0
      %880 = vmatprep.mubr.f32.mxu0 0.0
      %881 = vmatmul.mubr.f32.gmra.mxu0 %v764
      %v882 = vpop.f32.mrf.mxu0
      %v883 = vadd.f32 0.0, %v882
      %v884 = vpop.f32.mrf.mxu0
      %885 = vmatprep.mubr.f32.mxu0 0.0
      %886 = vmatmul.mubr.f32.gmra.mxu0 %v765
      %v887 = vpop.f32.mrf.mxu0
      %v888 = vadd.f32 0.0, %v887
      %v889 = vpop.f32.mrf.mxu0
      %890 = vmatprep.mubr.f32.mxu0 0.0
      %891 = vmatmul.mubr.f32.gmra.mxu0 %v766
      %v892 = vpop.f32.mrf.mxu0
      %v893 = vadd.f32 0.0, %v892
      %v894 = vpop.f32.mrf.mxu0
      %895 = vmatprep.mubr.f32.mxu0 0.0
      %896 = vmatmul.mubr.f32.gmra.mxu0 %v767
      %v897 = vpop.f32.mrf.mxu0
      %v898 = vadd.f32 0.0, %v897
      %v899 = vpop.f32.mrf.mxu0
      %900 = vmatprep.mubr.f32.mxu0 0.0
      %901 = vmatmul.mubr.f32.gmra.mxu0 %v768
      %v902 = vpop.f32.mrf.mxu0
      %v903 = vadd.f32 0.0, %v902
      %v904 = vpop.f32.mrf.mxu0
      %905 = vmatprep.mubr.f32.mxu0 0.0
      %906 = vmatmul.mubr.f32.gmra.mxu0 %v769
      %v907 = vpop.f32.mrf.mxu0
      %v908 = vadd.f32 0.0, %v907
      %v909 = vpop.f32.mrf.mxu0
      %910 = vmatprep.mubr.f32.mxu0 0.0
      %911 = vmatmul.mubr.f32.gmra.mxu0 %v770
      %v912 = vpop.f32.mrf.mxu0
      %v913 = vadd.f32 0.0, %v912
      %v914 = vpop.f32.mrf.mxu0
      %915 = vmatprep.mubr.f32.mxu0 0.0
      %916 = vmatmul.mubr.f32.gmra.mxu0 %v771
      %v917 = vpop.f32.mrf.mxu0
      %v918 = vadd.f32 0.0, %v917
      %v919 = vpop.f32.mrf.mxu0
      %920 = vmatprep.mubr.f32.mxu0 0.0
      %921 = vmatmul.mubr.f32.gmra.mxu0 %v772
      %v922 = vpop.f32.mrf.mxu0
      %v923 = vadd.f32 0.0, %v922
      %v924 = vpop.f32.mrf.mxu0
      %925 = vmatprep.mubr.f32.mxu0 0.0
      %926 = vmatmul.mubr.f32.gmra.mxu0 %v773
      %v927 = vpop.f32.mrf.mxu0
      %v928 = vadd.f32 0.0, %v927
      %v929 = vpop.f32.mrf.mxu0
      %930 = vmatprep.mubr.f32.mxu0 0.0
      %931 = vmatmul.mubr.f32.gmra.mxu0 %v774
      %v932 = vpop.f32.mrf.mxu0
      %v933 = vadd.f32 0.0, %v932
      %v934 = vpop.f32.mrf.mxu0
      %935 = vmatprep.mubr.f32.mxu0 0.0
      %936 = vmatmul.mubr.f32.gmra.mxu0 %v775
      %v937 = vpop.f32.mrf.mxu0
      %v938 = vadd.f32 0.0, %v937
      %v939 = vpop.f32.mrf.mxu0
      %940 = vmatprep.mubr.f32.mxu0 0.0
      %941 = vmatmul.mubr.f32.gmra.mxu0 %v776
      %v942 = vpop.f32.mrf.mxu0
      %v943 = vadd.f32 0.0, %v942
      %v944 = vpop.f32.mrf.mxu0
      %945 = vmatprep.mubr.f32.mxu0 0.0
      %946 = vmatmul.mubr.f32.gmra.mxu0 %v777
      %v947 = vpop.f32.mrf.mxu0
      %v948 = vadd.f32 0.0, %v947
      %v949 = vpop.f32.mrf.mxu0
      %950 = vmatprep.mubr.f32.mxu0 0.0
      %951 = vmatmul.mubr.f32.gmra.mxu0 %v778
      %v952 = vpop.f32.mrf.mxu0
      %v953 = vadd.f32 0.0, %v952
      %v954 = vpop.f32.mrf.mxu0
      %955 = vdwg.mxu0
      %v956 = vmax.f32 %v878, -5.0
      %v957 = vmax.f32 %v883, -5.0
      %v958 = vmax.f32 %v888, -5.0
      %v959 = vmax.f32 %v893, -5.0
      %v960 = vmax.f32 %v898, -5.0
      %v961 = vmax.f32 %v903, -5.0
      %v962 = vmax.f32 %v908, -5.0
      %v963 = vmax.f32 %v913, -5.0
      %v964 = vmax.f32 %v918, -5.0
      %v965 = vmax.f32 %v923, -5.0
      %v966 = vmax.f32 %v928, -5.0
      %v967 = vmax.f32 %v933, -5.0
      %v968 = vmax.f32 %v938, -5.0
      %v969 = vmax.f32 %v943, -5.0
      %v970 = vmax.f32 %v948, -5.0
      %v971 = vmax.f32 %v953, -5.0
      %v972 = vmin.f32 %v956, 5.0
      %v973 = vmin.f32 %v957, 5.0
      %v974 = vmin.f32 %v958, 5.0
      %v975 = vmin.f32 %v959, 5.0
      %v976 = vmin.f32 %v960, 5.0
      %v977 = vmin.f32 %v961, 5.0
      %v978 = vmin.f32 %v962, 5.0
      %v979 = vmin.f32 %v963, 5.0
      %v980 = vmin.f32 %v964, 5.0
      %v981 = vmin.f32 %v965, 5.0
      %v982 = vmin.f32 %v966, 5.0
      %v983 = vmin.f32 %v967, 5.0
      %v984 = vmin.f32 %v968, 5.0
      %v985 = vmin.f32 %v969, 5.0
      %v986 = vmin.f32 %v970, 5.0
      %v987 = vmin.f32 %v971, 5.0
      %v988 = vmul.f32 %v972, 1.442695
      %v989 = vpow.pop %v988
      %v990 = vmul.f32 %v973, 1.442695
      %v991 = vpow.pop %v990
      %v992 = vmul.f32 %v974, 1.442695
      %v993 = vpow.pop %v992
      %v994 = vmul.f32 %v975, 1.442695
      %v995 = vpow.pop %v994
      %v996 = vmul.f32 %v976, 1.442695
      %v997 = vpow.pop %v996
      %v998 = vmul.f32 %v977, 1.442695
      %v999 = vpow.pop %v998
      %v1000 = vmul.f32 %v978, 1.442695
      %v1001 = vpow.pop %v1000
      %v1002 = vmul.f32 %v979, 1.442695
      %v1003 = vpow.pop %v1002
      %v1004 = vmul.f32 %v980, 1.442695
      %v1005 = vpow.pop %v1004
      %v1006 = vmul.f32 %v981, 1.442695
      %v1007 = vpow.pop %v1006
      %v1008 = vmul.f32 %v982, 1.442695
      %v1009 = vpow.pop %v1008
      %v1010 = vmul.f32 %v983, 1.442695
      %v1011 = vpow.pop %v1010
      %v1012 = vmul.f32 %v984, 1.442695
      %v1013 = vpow.pop %v1012
      %v1014 = vmul.f32 %v985, 1.442695
      %v1015 = vpow.pop %v1014
      %v1016 = vmul.f32 %v986, 1.442695
      %v1017 = vpow.pop %v1016
      %v1018 = vmul.f32 %v987, 1.442695
      %v1019 = vpow.pop %v1018
      %v1020 = vld [vmem:[%s438] sm:$0xff]
      %v1021 = vld [vmem:[%s438 + $0x8] sm:$0xff]
      %v1022 = vld [vmem:[%s438 + $0x10] sm:$0xff]
      %v1023 = vld [vmem:[%s438 + $0x18] sm:$0xff]
      %v1024 = vld [vmem:[%s438 + $0x20] sm:$0xff]
      %v1025 = vld [vmem:[%s438 + $0x28] sm:$0xff]
      %v1026 = vld [vmem:[%s438 + $0x30] sm:$0xff]
      %v1027 = vld [vmem:[%s438 + $0x38] sm:$0xff]
      %v1028 = vld [vmem:[%s438 + $0x40] sm:$0xff]
      %v1029 = vld [vmem:[%s438 + $0x48] sm:$0xff]
      %v1030 = vld [vmem:[%s438 + $0x50] sm:$0xff]
      %v1031 = vld [vmem:[%s438 + $0x58] sm:$0xff]
      %v1032 = vld [vmem:[%s438 + $0x60] sm:$0xff]
      %v1033 = vld [vmem:[%s438 + $0x68] sm:$0xff]
      %v1034 = vld [vmem:[%s438 + $0x70] sm:$0xff]
      %v1035 = vld [vmem:[%s438 + $0x78] sm:$0xff]
      %v1036 = vld [vmem:[%s450] sm:$0xff]
      %v1037 = vld [vmem:[%s450 + $0x8] sm:$0xff]
      %v1038 = vld [vmem:[%s450 + $0x10] sm:$0xff]
      %v1039 = vld [vmem:[%s450 + $0x18] sm:$0xff]
      %v1040 = vld [vmem:[%s450 + $0x20] sm:$0xff]
      %v1041 = vld [vmem:[%s450 + $0x28] sm:$0xff]
      %v1042 = vld [vmem:[%s450 + $0x30] sm:$0xff]
      %v1043 = vld [vmem:[%s450 + $0x38] sm:$0xff]
      %v1044 = vld [vmem:[%s450 + $0x40] sm:$0xff]
      %v1045 = vld [vmem:[%s450 + $0x48] sm:$0xff]
      %v1046 = vld [vmem:[%s450 + $0x50] sm:$0xff]
      %v1047 = vld [vmem:[%s450 + $0x58] sm:$0xff]
      %v1048 = vld [vmem:[%s450 + $0x60] sm:$0xff]
      %v1049 = vld [vmem:[%s450 + $0x68] sm:$0xff]
      %v1050 = vld [vmem:[%s450 + $0x70] sm:$0xff]
      %v1051 = vld [vmem:[%s450 + $0x78] sm:$0xff]
      %1053 = vset.pattern.permute.xlu0 0
      %1054 = vperm.xlu0 %1053, %v1036
      %v1055 = vpop.permute.xlu0 %1054
      %1058 = vset.pattern.permute.xlu0 0
      %1059 = vperm.xlu0 %1058, %v1037
      %v1060 = vpop.permute.xlu0 %1059
      %1063 = vset.pattern.permute.xlu0 0
      %1064 = vperm.xlu0 %1063, %v1038
      %v1065 = vpop.permute.xlu0 %1064
      %1068 = vset.pattern.permute.xlu0 0
      %1069 = vperm.xlu0 %1068, %v1039
      %v1070 = vpop.permute.xlu0 %1069
      %1073 = vset.pattern.permute.xlu0 0
      %1074 = vperm.xlu0 %1073, %v1040
      %v1075 = vpop.permute.xlu0 %1074
      %1078 = vset.pattern.permute.xlu0 0
      %1079 = vperm.xlu0 %1078, %v1041
      %v1080 = vpop.permute.xlu0 %1079
      %1083 = vset.pattern.permute.xlu0 0
      %1084 = vperm.xlu0 %1083, %v1042
      %v1085 = vpop.permute.xlu0 %1084
      %1088 = vset.pattern.permute.xlu0 0
      %1089 = vperm.xlu0 %1088, %v1043
      %v1090 = vpop.permute.xlu0 %1089
      %1093 = vset.pattern.permute.xlu0 0
      %1094 = vperm.xlu0 %1093, %v1044
      %v1095 = vpop.permute.xlu0 %1094
      %1098 = vset.pattern.permute.xlu0 0
      %1099 = vperm.xlu0 %1098, %v1045
      %v1100 = vpop.permute.xlu0 %1099
      %1103 = vset.pattern.permute.xlu0 0
      %1104 = vperm.xlu0 %1103, %v1046
      %v1105 = vpop.permute.xlu0 %1104
      %1108 = vset.pattern.permute.xlu0 0
      %1109 = vperm.xlu0 %1108, %v1047
      %v1110 = vpop.permute.xlu0 %1109
      %1113 = vset.pattern.permute.xlu0 0
      %1114 = vperm.xlu0 %1113, %v1048
      %v1115 = vpop.permute.xlu0 %1114
      %1118 = vset.pattern.permute.xlu0 0
      %1119 = vperm.xlu0 %1118, %v1049
      %v1120 = vpop.permute.xlu0 %1119
      %1123 = vset.pattern.permute.xlu0 0
      %1124 = vperm.xlu0 %1123, %v1050
      %v1125 = vpop.permute.xlu0 %1124
      %1128 = vset.pattern.permute.xlu0 0
      %1129 = vperm.xlu0 %1128, %v1051
      %v1130 = vpop.permute.xlu0 %1129
      %v1132 = vmul.f32 %v1020, %v1055
      %v1133 = vmul.f32 %v1021, %v1060
      %v1134 = vmul.f32 %v1022, %v1065
      %v1135 = vmul.f32 %v1023, %v1070
      %v1136 = vmul.f32 %v1024, %v1075
      %v1137 = vmul.f32 %v1025, %v1080
      %v1138 = vmul.f32 %v1026, %v1085
      %v1139 = vmul.f32 %v1027, %v1090
      %v1140 = vmul.f32 %v1028, %v1095
      %v1141 = vmul.f32 %v1029, %v1100
      %v1142 = vmul.f32 %v1030, %v1105
      %v1143 = vmul.f32 %v1031, %v1110
      %v1144 = vmul.f32 %v1032, %v1115
      %v1145 = vmul.f32 %v1033, %v1120
      %v1146 = vmul.f32 %v1034, %v1125
      %v1147 = vmul.f32 %v1035, %v1130
      %v1148 = vmul.f32 %v1132, %v989
      %v1149 = vmul.f32 %v1133, %v991
      %v1150 = vmul.f32 %v1134, %v993
      %v1151 = vmul.f32 %v1135, %v995
      %v1152 = vmul.f32 %v1136, %v997
      %v1153 = vmul.f32 %v1137, %v999
      %v1154 = vmul.f32 %v1138, %v1001
      %v1155 = vmul.f32 %v1139, %v1003
      %v1156 = vmul.f32 %v1140, %v1005
      %v1157 = vmul.f32 %v1141, %v1007
      %v1158 = vmul.f32 %v1142, %v1009
      %v1159 = vmul.f32 %v1143, %v1011
      %v1160 = vmul.f32 %v1144, %v1013
      %v1161 = vmul.f32 %v1145, %v1015
      %v1162 = vmul.f32 %v1146, %v1017
      %v1163 = vmul.f32 %v1147, %v1019
      %v1164 = vlaneseq
      %v1165 = vand.u32 %v1164, 127
      %v1166 = vld [vmem:[%s456] sm:$0xff]
      %v1167 = vld [vmem:[%s456 + $0x8] sm:$0xff]
      %v1168 = vld [vmem:[%s456 + $0x10] sm:$0xff]
      %v1169 = vld [vmem:[%s456 + $0x18] sm:$0xff]
      %v1170 = vld [vmem:[%s456 + $0x20] sm:$0xff]
      %v1171 = vld [vmem:[%s456 + $0x28] sm:$0xff]
      %v1172 = vld [vmem:[%s456 + $0x30] sm:$0xff]
      %v1173 = vld [vmem:[%s456 + $0x38] sm:$0xff]
      %v1174 = vld [vmem:[%s456 + $0x40] sm:$0xff]
      %v1175 = vld [vmem:[%s456 + $0x48] sm:$0xff]
      %v1176 = vld [vmem:[%s456 + $0x50] sm:$0xff]
      %v1177 = vld [vmem:[%s456 + $0x58] sm:$0xff]
      %v1178 = vld [vmem:[%s456 + $0x60] sm:$0xff]
      %v1179 = vld [vmem:[%s456 + $0x68] sm:$0xff]
      %v1180 = vld [vmem:[%s456 + $0x70] sm:$0xff]
      %v1181 = vld [vmem:[%s456 + $0x78] sm:$0xff]
      %1182 = vset.pattern.permute.xlu0 0
      %1183 = vperm.xlu0 %1182, %v1166
      %v1184 = vpop.permute.xlu0 %1183
      %1185 = vset.pattern.permute.xlu0 0
      %1186 = vperm.xlu0 %1185, %v1167
      %v1187 = vpop.permute.xlu0 %1186
      %1188 = vset.pattern.permute.xlu0 0
      %1189 = vperm.xlu0 %1188, %v1168
      %v1190 = vpop.permute.xlu0 %1189
      %1191 = vset.pattern.permute.xlu0 0
      %1192 = vperm.xlu0 %1191, %v1169
      %v1193 = vpop.permute.xlu0 %1192
      %1194 = vset.pattern.permute.xlu0 0
      %1195 = vperm.xlu0 %1194, %v1170
      %v1196 = vpop.permute.xlu0 %1195
      %1197 = vset.pattern.permute.xlu0 0
      %1198 = vperm.xlu0 %1197, %v1171
      %v1199 = vpop.permute.xlu0 %1198
      %1200 = vset.pattern.permute.xlu0 0
      %1201 = vperm.xlu0 %1200, %v1172
      %v1202 = vpop.permute.xlu0 %1201
      %1203 = vset.pattern.permute.xlu0 0
      %1204 = vperm.xlu0 %1203, %v1173
      %v1205 = vpop.permute.xlu0 %1204
      %1206 = vset.pattern.permute.xlu0 0
      %1207 = vperm.xlu0 %1206, %v1174
      %v1208 = vpop.permute.xlu0 %1207
      %1209 = vset.pattern.permute.xlu0 0
      %1210 = vperm.xlu0 %1209, %v1175
      %v1211 = vpop.permute.xlu0 %1210
      %1212 = vset.pattern.permute.xlu0 0
      %1213 = vperm.xlu0 %1212, %v1176
      %v1214 = vpop.permute.xlu0 %1213
      %1215 = vset.pattern.permute.xlu0 0
      %1216 = vperm.xlu0 %1215, %v1177
      %v1217 = vpop.permute.xlu0 %1216
      %1218 = vset.pattern.permute.xlu0 0
      %1219 = vperm.xlu0 %1218, %v1178
      %v1220 = vpop.permute.xlu0 %1219
      %1221 = vset.pattern.permute.xlu0 0
      %1222 = vperm.xlu0 %1221, %v1179
      %v1223 = vpop.permute.xlu0 %1222
      %1224 = vset.pattern.permute.xlu0 0
      %1225 = vperm.xlu0 %1224, %v1180
      %v1226 = vpop.permute.xlu0 %1225
      %1227 = vset.pattern.permute.xlu0 0
      %1228 = vperm.xlu0 %1227, %v1181
      %v1229 = vpop.permute.xlu0 %1228
      %vm1230 = vcmp.eq.s32.totalorder %v1165, %v1184
      %vm1231 = vcmp.eq.s32.totalorder %v1165, %v1187
      %vm1232 = vcmp.eq.s32.totalorder %v1165, %v1190
      %vm1233 = vcmp.eq.s32.totalorder %v1165, %v1193
      %vm1234 = vcmp.eq.s32.totalorder %v1165, %v1196
      %vm1235 = vcmp.eq.s32.totalorder %v1165, %v1199
      %vm1236 = vcmp.eq.s32.totalorder %v1165, %v1202
      %vm1237 = vcmp.eq.s32.totalorder %v1165, %v1205
      %vm1238 = vcmp.eq.s32.totalorder %v1165, %v1208
      %vm1239 = vcmp.eq.s32.totalorder %v1165, %v1211
      %vm1240 = vcmp.eq.s32.totalorder %v1165, %v1214
      %vm1241 = vcmp.eq.s32.totalorder %v1165, %v1217
      %vm1242 = vcmp.eq.s32.totalorder %v1165, %v1220
      %vm1243 = vcmp.eq.s32.totalorder %v1165, %v1223
      %vm1244 = vcmp.eq.s32.totalorder %v1165, %v1226
      %vm1245 = vcmp.eq.s32.totalorder %v1165, %v1229
      %v1246 = vsel %vm1230, 1, 0
      %v1247 = vsel %vm1231, 1, 0
      %v1248 = vsel %vm1232, 1, 0
      %v1249 = vsel %vm1233, 1, 0
      %v1250 = vsel %vm1234, 1, 0
      %v1251 = vsel %vm1235, 1, 0
      %v1252 = vsel %vm1236, 1, 0
      %v1253 = vsel %vm1237, 1, 0
      %v1254 = vsel %vm1238, 1, 0
      %v1255 = vsel %vm1239, 1, 0
      %v1256 = vsel %vm1240, 1, 0
      %v1257 = vsel %vm1241, 1, 0
      %v1258 = vsel %vm1242, 1, 0
      %v1259 = vsel %vm1243, 1, 0
      %v1260 = vsel %vm1244, 1, 0
      %v1261 = vsel %vm1245, 1, 0
      %v1262 = vcvt.s32.f32 %v1246
      %v1263 = vcvt.s32.f32 %v1247
      %v1264 = vcvt.s32.f32 %v1248
      %v1265 = vcvt.s32.f32 %v1249
      %v1266 = vcvt.s32.f32 %v1250
      %v1267 = vcvt.s32.f32 %v1251
      %v1268 = vcvt.s32.f32 %v1252
      %v1269 = vcvt.s32.f32 %v1253
      %v1270 = vcvt.s32.f32 %v1254
      %v1271 = vcvt.s32.f32 %v1255
      %v1272 = vcvt.s32.f32 %v1256
      %v1273 = vcvt.s32.f32 %v1257
      %v1274 = vcvt.s32.f32 %v1258
      %v1275 = vcvt.s32.f32 %v1259
      %v1276 = vcvt.s32.f32 %v1260
      %v1277 = vcvt.s32.f32 %v1261
      %1278 = vxpose.xlu0.b32.start [1/16] %v1262, 128
      %1279 = vxpose.xlu0.b32.cont [2/16] %v1263, 128
      %1280 = vxpose.xlu0.b32.cont [3/16] %v1264, 128
      %1281 = vxpose.xlu0.b32.cont [4/16] %v1265, 128
      %1282 = vxpose.xlu0.b32.cont [5/16] %v1266, 128
      %1283 = vxpose.xlu0.b32.cont [6/16] %v1267, 128
      %1284 = vxpose.xlu0.b32.cont [7/16] %v1268, 128
      %1285 = vxpose.xlu0.b32.cont [8/16] %v1269, 128
      %1286 = vxpose.xlu0.b32.cont [9/16] %v1270, 128
      %1287 = vxpose.xlu0.b32.cont [10/16] %v1271, 128
      %1288 = vxpose.xlu0.b32.cont [11/16] %v1272, 128
      %1289 = vxpose.xlu0.b32.cont [12/16] %v1273, 128
      %1290 = vxpose.xlu0.b32.cont [13/16] %v1274, 128
      %1291 = vxpose.xlu0.b32.cont [14/16] %v1275, 128
      %1292 = vxpose.xlu0.b32.cont [15/16] %v1276, 128
      %1293 = vxpose.xlu0.b32.end [16/16] %v1277, 128
      %v1294 = vpop.trf.xlu0
      %v1295 = vpop.trf.xlu0
      %v1296 = vpop.trf.xlu0
      %v1297 = vpop.trf.xlu0
      %v1298 = vpop.trf.xlu0
      %v1299 = vpop.trf.xlu0
      %v1300 = vpop.trf.xlu0
      %v1301 = vpop.trf.xlu0
      %v1302 = vpop.trf.xlu0
      %v1303 = vpop.trf.xlu0
      %v1304 = vpop.trf.xlu0
      %v1305 = vpop.trf.xlu0
      %v1306 = vpop.trf.xlu0
      %v1307 = vpop.trf.xlu0
      %v1308 = vpop.trf.xlu0
      %v1309 = vpop.trf.xlu0
      %v1310 = vld [vmem:[#allocation2] sm:$0xff]
      %v1311 = vld [vmem:[#allocation2 + $0x8] sm:$0xff]
      %v1312 = vld [vmem:[#allocation2 + $0x10] sm:$0xff]
      %v1313 = vld [vmem:[#allocation2 + $0x18] sm:$0xff]
      %v1314 = vld [vmem:[#allocation2 + $0x20] sm:$0xff]
      %v1315 = vld [vmem:[#allocation2 + $0x28] sm:$0xff]
      %v1316 = vld [vmem:[#allocation2 + $0x30] sm:$0xff]
      %v1317 = vld [vmem:[#allocation2 + $0x38] sm:$0xff]
      %v1318 = vld [vmem:[#allocation2 + $0x40] sm:$0xff]
      %v1319 = vld [vmem:[#allocation2 + $0x48] sm:$0xff]
      %v1320 = vld [vmem:[#allocation2 + $0x50] sm:$0xff]
      %v1321 = vld [vmem:[#allocation2 + $0x58] sm:$0xff]
      %v1322 = vld [vmem:[#allocation2 + $0x60] sm:$0xff]
      %v1323 = vld [vmem:[#allocation2 + $0x68] sm:$0xff]
      %v1324 = vld [vmem:[#allocation2 + $0x70] sm:$0xff]
      %v1325 = vld [vmem:[#allocation2 + $0x78] sm:$0xff]
      %1326 = vmatprep.subr.mxu0 0.0
      %1327 = vmatpush1.msra.mxu0 %v1163
      %1328 = vmatprep.subr.mxu0 0.0
      %1329 = vmatpush1.msra.mxu0 %v1162
      %1330 = vmatprep.subr.mxu0 0.0
      %1331 = vmatpush1.msra.mxu0 %v1161
      %1332 = vmatprep.subr.mxu0 0.0
      %1333 = vmatpush1.msra.mxu0 %v1160
      %1334 = vmatprep.subr.mxu0 0.0
      %1335 = vmatpush1.msra.mxu0 %v1159
      %1336 = vmatprep.subr.mxu0 0.0
      %1337 = vmatpush1.msra.mxu0 %v1158
      %1338 = vmatprep.subr.mxu0 0.0
      %1339 = vmatpush1.msra.mxu0 %v1157
      %1340 = vmatprep.subr.mxu0 0.0
      %1341 = vmatpush1.msra.mxu0 %v1156
      %1342 = vmatprep.subr.mxu0 0.0
      %1343 = vmatpush1.msra.mxu0 %v1155
      %1344 = vmatprep.subr.mxu0 0.0
      %1345 = vmatpush1.msra.mxu0 %v1154
      %1346 = vmatprep.subr.mxu0 0.0
      %1347 = vmatpush1.msra.mxu0 %v1153
      %1348 = vmatprep.subr.mxu0 0.0
      %1349 = vmatpush1.msra.mxu0 %v1152
      %1350 = vmatprep.subr.mxu0 0.0
      %1351 = vmatpush1.msra.mxu0 %v1151
      %1352 = vmatprep.subr.mxu0 0.0
      %1353 = vmatpush1.msra.mxu0 %v1150
      %1354 = vmatprep.subr.mxu0 0.0
      %1355 = vmatpush1.msra.mxu0 %v1149
      %1356 = vmatprep.subr.mxu0 0.0
      %1357 = vmatpush1.msra.mxu0 %v1148
      %1358 = vmatprep.subr.mxu0 0.0
      %1359 = vmatpush2.msra.mxu0 0.0
      %1360 = vmatprep.subr.mxu0 0.0
      %1361 = vmatpush2.msra.mxu0 0.0
      %1362 = vmatprep.subr.mxu0 0.0
      %1363 = vmatpush2.msra.mxu0 0.0
      %1364 = vmatprep.subr.mxu0 0.0
      %1365 = vmatpush2.msra.mxu0 0.0
      %1366 = vmatprep.subr.mxu0 0.0
      %1367 = vmatpush2.msra.mxu0 0.0
      %1368 = vmatprep.subr.mxu0 0.0
      %1369 = vmatpush2.msra.mxu0 0.0
      %1370 = vmatprep.subr.mxu0 0.0
      %1371 = vmatpush2.msra.mxu0 0.0
      %1372 = vmatprep.subr.mxu0 0.0
      %1373 = vmatpush2.msra.mxu0 0.0
      %1374 = vmatprep.subr.mxu0 0.0
      %1375 = vmatpush2.msra.mxu0 0.0
      %1376 = vmatprep.subr.mxu0 0.0
      %1377 = vmatpush2.msra.mxu0 0.0
      %1378 = vmatprep.subr.mxu0 0.0
      %1379 = vmatpush2.msra.mxu0 0.0
      %1380 = vmatprep.subr.mxu0 0.0
      %1381 = vmatpush2.msra.mxu0 0.0
      %1382 = vmatprep.subr.mxu0 0.0
      %1383 = vmatpush2.msra.mxu0 0.0
      %1384 = vmatprep.subr.mxu0 0.0
      %1385 = vmatpush2.msra.mxu0 0.0
      %1386 = vmatprep.subr.mxu0 0.0
      %1387 = vmatpush2.msra.mxu0 0.0
      %1388 = vmatprep.subr.mxu0 0.0
      %1389 = vmatpush2.msra.mxu0 0.0
      %1390 = vmatprep.mubr.f32.mxu0 0.0
      %1391 = vmatmul.mubr.f32.gmra.mxu0 %v1294
      %v1392 = vpop.f32.mrf.mxu0
      %v1393 = vadd.f32 0.0, %v1392
      %v1394 = vpop.f32.mrf.mxu0
      %1395 = vmatprep.mubr.f32.mxu0 0.0
      %1396 = vmatmul.mubr.f32.gmra.mxu0 %v1295
      %v1397 = vpop.f32.mrf.mxu0
      %v1398 = vadd.f32 0.0, %v1397
      %v1399 = vpop.f32.mrf.mxu0
      %1400 = vmatprep.mubr.f32.mxu0 0.0
      %1401 = vmatmul.mubr.f32.gmra.mxu0 %v1296
      %v1402 = vpop.f32.mrf.mxu0
      %v1403 = vadd.f32 0.0, %v1402
      %v1404 = vpop.f32.mrf.mxu0
      %1405 = vmatprep.mubr.f32.mxu0 0.0
      %1406 = vmatmul.mubr.f32.gmra.mxu0 %v1297
      %v1407 = vpop.f32.mrf.mxu0
      %v1408 = vadd.f32 0.0, %v1407
      %v1409 = vpop.f32.mrf.mxu0
      %1410 = vmatprep.mubr.f32.mxu0 0.0
      %1411 = vmatmul.mubr.f32.gmra.mxu0 %v1298
      %v1412 = vpop.f32.mrf.mxu0
      %v1413 = vadd.f32 0.0, %v1412
      %v1414 = vpop.f32.mrf.mxu0
      %1415 = vmatprep.mubr.f32.mxu0 0.0
      %1416 = vmatmul.mubr.f32.gmra.mxu0 %v1299
      %v1417 = vpop.f32.mrf.mxu0
      %v1418 = vadd.f32 0.0, %v1417
      %v1419 = vpop.f32.mrf.mxu0
      %1420 = vmatprep.mubr.f32.mxu0 0.0
      %1421 = vmatmul.mubr.f32.gmra.mxu0 %v1300
      %v1422 = vpop.f32.mrf.mxu0
      %v1423 = vadd.f32 0.0, %v1422
      %v1424 = vpop.f32.mrf.mxu0
      %1425 = vmatprep.mubr.f32.mxu0 0.0
      %1426 = vmatmul.mubr.f32.gmra.mxu0 %v1301
      %v1427 = vpop.f32.mrf.mxu0
      %v1428 = vadd.f32 0.0, %v1427
      %v1429 = vpop.f32.mrf.mxu0
      %1430 = vmatprep.mubr.f32.mxu0 0.0
      %1431 = vmatmul.mubr.f32.gmra.mxu0 %v1302
      %v1432 = vpop.f32.mrf.mxu0
      %v1433 = vadd.f32 0.0, %v1432
      %v1434 = vpop.f32.mrf.mxu0
      %1435 = vmatprep.mubr.f32.mxu0 0.0
      %1436 = vmatmul.mubr.f32.gmra.mxu0 %v1303
      %v1437 = vpop.f32.mrf.mxu0
      %v1438 = vadd.f32 0.0, %v1437
      %v1439 = vpop.f32.mrf.mxu0
      %1440 = vmatprep.mubr.f32.mxu0 0.0
      %1441 = vmatmul.mubr.f32.gmra.mxu0 %v1304
      %v1442 = vpop.f32.mrf.mxu0
      %v1443 = vadd.f32 0.0, %v1442
      %v1444 = vpop.f32.mrf.mxu0
      %1445 = vmatprep.mubr.f32.mxu0 0.0
      %1446 = vmatmul.mubr.f32.gmra.mxu0 %v1305
      %v1447 = vpop.f32.mrf.mxu0
      %v1448 = vadd.f32 0.0, %v1447
      %v1449 = vpop.f32.mrf.mxu0
      %1450 = vmatprep.mubr.f32.mxu0 0.0
      %1451 = vmatmul.mubr.f32.gmra.mxu0 %v1306
      %v1452 = vpop.f32.mrf.mxu0
      %v1453 = vadd.f32 0.0, %v1452
      %v1454 = vpop.f32.mrf.mxu0
      %1455 = vmatprep.mubr.f32.mxu0 0.0
      %1456 = vmatmul.mubr.f32.gmra.mxu0 %v1307
      %v1457 = vpop.f32.mrf.mxu0
      %v1458 = vadd.f32 0.0, %v1457
      %v1459 = vpop.f32.mrf.mxu0
      %1460 = vmatprep.mubr.f32.mxu0 0.0
      %1461 = vmatmul.mubr.f32.gmra.mxu0 %v1308
      %v1462 = vpop.f32.mrf.mxu0
      %v1463 = vadd.f32 0.0, %v1462
      %v1464 = vpop.f32.mrf.mxu0
      %1465 = vmatprep.mubr.f32.mxu0 0.0
      %1466 = vmatmul.mubr.f32.gmra.mxu0 %v1309
      %v1467 = vpop.f32.mrf.mxu0
      %v1468 = vadd.f32 0.0, %v1467
      %v1469 = vpop.f32.mrf.mxu0
      %1470 = vdwg.mxu0
      %v1471 = vadd.f32 %v1310, %v1393
      %v1472 = vadd.f32 %v1311, %v1398
      %v1473 = vadd.f32 %v1312, %v1403
      %v1474 = vadd.f32 %v1313, %v1408
      %v1475 = vadd.f32 %v1314, %v1413
      %v1476 = vadd.f32 %v1315, %v1418
      %v1477 = vadd.f32 %v1316, %v1423
      %v1478 = vadd.f32 %v1317, %v1428
      %v1479 = vadd.f32 %v1318, %v1433
      %v1480 = vadd.f32 %v1319, %v1438
      %v1481 = vadd.f32 %v1320, %v1443
      %v1482 = vadd.f32 %v1321, %v1448
      %v1483 = vadd.f32 %v1322, %v1453
      %v1484 = vadd.f32 %v1323, %v1458
      %v1485 = vadd.f32 %v1324, %v1463
      %v1486 = vadd.f32 %v1325, %v1468
      %1487 = vst [vmem:[#allocation2] sm:$0xff] %v1471
      %1488 = vst [vmem:[#allocation2 + $0x8] sm:$0xff] %v1472
      %1489 = vst [vmem:[#allocation2 + $0x10] sm:$0xff] %v1473
      %1490 = vst [vmem:[#allocation2 + $0x18] sm:$0xff] %v1474
      %1491 = vst [vmem:[#allocation2 + $0x20] sm:$0xff] %v1475
      %1492 = vst [vmem:[#allocation2 + $0x28] sm:$0xff] %v1476
      %1493 = vst [vmem:[#allocation2 + $0x30] sm:$0xff] %v1477
      %1494 = vst [vmem:[#allocation2 + $0x38] sm:$0xff] %v1478
      %1495 = vst [vmem:[#allocation2 + $0x40] sm:$0xff] %v1479
      %1496 = vst [vmem:[#allocation2 + $0x48] sm:$0xff] %v1480
      %1497 = vst [vmem:[#allocation2 + $0x50] sm:$0xff] %v1481
      %1498 = vst [vmem:[#allocation2 + $0x58] sm:$0xff] %v1482
      %1499 = vst [vmem:[#allocation2 + $0x60] sm:$0xff] %v1483
      %1500 = vst [vmem:[#allocation2 + $0x68] sm:$0xff] %v1484
      %1501 = vst [vmem:[#allocation2 + $0x70] sm:$0xff] %v1485
      %1502 = vst [vmem:[#allocation2 + $0x78] sm:$0xff] %v1486
      %v1503 = vld [vmem:[#allocation3] sm:$0xff]
      %v1504 = vld [vmem:[#allocation3 + $0x8] sm:$0xff]
      %v1505 = vld [vmem:[#allocation3 + $0x10] sm:$0xff]
      %v1506 = vld [vmem:[#allocation3 + $0x18] sm:$0xff]
      %v1507 = vld [vmem:[#allocation3 + $0x20] sm:$0xff]
      %v1508 = vld [vmem:[#allocation3 + $0x28] sm:$0xff]
      %v1509 = vld [vmem:[#allocation3 + $0x30] sm:$0xff]
      %v1510 = vld [vmem:[#allocation3 + $0x38] sm:$0xff]
      %v1511 = vld [vmem:[#allocation3 + $0x40] sm:$0xff]
      %v1512 = vld [vmem:[#allocation3 + $0x48] sm:$0xff]
      %v1513 = vld [vmem:[#allocation3 + $0x50] sm:$0xff]
      %v1514 = vld [vmem:[#allocation3 + $0x58] sm:$0xff]
      %v1515 = vld [vmem:[#allocation3 + $0x60] sm:$0xff]
      %v1516 = vld [vmem:[#allocation3 + $0x68] sm:$0xff]
      %v1517 = vld [vmem:[#allocation3 + $0x70] sm:$0xff]
      %v1518 = vld [vmem:[#allocation3 + $0x78] sm:$0xff]
      %1519 = vmatprep.subr.mxu0 0.0
      %1520 = vmatpush1.msra.mxu0 %v1019
      %1521 = vmatprep.subr.mxu0 0.0
      %1522 = vmatpush1.msra.mxu0 %v1017
      %1523 = vmatprep.subr.mxu0 0.0
      %1524 = vmatpush1.msra.mxu0 %v1015
      %1525 = vmatprep.subr.mxu0 0.0
      %1526 = vmatpush1.msra.mxu0 %v1013
      %1527 = vmatprep.subr.mxu0 0.0
      %1528 = vmatpush1.msra.mxu0 %v1011
      %1529 = vmatprep.subr.mxu0 0.0
      %1530 = vmatpush1.msra.mxu0 %v1009
      %1531 = vmatprep.subr.mxu0 0.0
      %1532 = vmatpush1.msra.mxu0 %v1007
      %1533 = vmatprep.subr.mxu0 0.0
      %1534 = vmatpush1.msra.mxu0 %v1005
      %1535 = vmatprep.subr.mxu0 0.0
      %1536 = vmatpush1.msra.mxu0 %v1003
      %1537 = vmatprep.subr.mxu0 0.0
      %1538 = vmatpush1.msra.mxu0 %v1001
      %1539 = vmatprep.subr.mxu0 0.0
      %1540 = vmatpush1.msra.mxu0 %v999
      %1541 = vmatprep.subr.mxu0 0.0
      %1542 = vmatpush1.msra.mxu0 %v997
      %1543 = vmatprep.subr.mxu0 0.0
      %1544 = vmatpush1.msra.mxu0 %v995
      %1545 = vmatprep.subr.mxu0 0.0
      %1546 = vmatpush1.msra.mxu0 %v993
      %1547 = vmatprep.subr.mxu0 0.0
      %1548 = vmatpush1.msra.mxu0 %v991
      %1549 = vmatprep.subr.mxu0 0.0
      %1550 = vmatpush1.msra.mxu0 %v989
      %1551 = vmatprep.subr.mxu0 0.0
      %1552 = vmatpush2.msra.mxu0 0.0
      %1553 = vmatprep.subr.mxu0 0.0
      %1554 = vmatpush2.msra.mxu0 0.0
      %1555 = vmatprep.subr.mxu0 0.0
      %1556 = vmatpush2.msra.mxu0 0.0
      %1557 = vmatprep.subr.mxu0 0.0
      %1558 = vmatpush2.msra.mxu0 0.0
      %1559 = vmatprep.subr.mxu0 0.0
      %1560 = vmatpush2.msra.mxu0 0.0
      %1561 = vmatprep.subr.mxu0 0.0
      %1562 = vmatpush2.msra.mxu0 0.0
      %1563 = vmatprep.subr.mxu0 0.0
      %1564 = vmatpush2.msra.mxu0 0.0
      %1565 = vmatprep.subr.mxu0 0.0
      %1566 = vmatpush2.msra.mxu0 0.0
      %1567 = vmatprep.subr.mxu0 0.0
      %1568 = vmatpush2.msra.mxu0 0.0
      %1569 = vmatprep.subr.mxu0 0.0
      %1570 = vmatpush2.msra.mxu0 0.0
      %1571 = vmatprep.subr.mxu0 0.0
      %1572 = vmatpush2.msra.mxu0 0.0
      %1573 = vmatprep.subr.mxu0 0.0
      %1574 = vmatpush2.msra.mxu0 0.0
      %1575 = vmatprep.subr.mxu0 0.0
      %1576 = vmatpush2.msra.mxu0 0.0
      %1577 = vmatprep.subr.mxu0 0.0
      %1578 = vmatpush2.msra.mxu0 0.0
      %1579 = vmatprep.subr.mxu0 0.0
      %1580 = vmatpush2.msra.mxu0 0.0
      %1581 = vmatprep.subr.mxu0 0.0
      %1582 = vmatpush2.msra.mxu0 0.0
      %1583 = vmatprep.mubr.f32.mxu0 0.0
      %1584 = vmatmul.mubr.f32.gmra.mxu0 %v1294
      %v1585 = vpop.f32.mrf.mxu0
      %v1586 = vadd.f32 0.0, %v1585
      %v1587 = vpop.f32.mrf.mxu0
      %1588 = vmatprep.mubr.f32.mxu0 0.0
      %1589 = vmatmul.mubr.f32.gmra.mxu0 %v1295
      %v1590 = vpop.f32.mrf.mxu0
      %v1591 = vadd.f32 0.0, %v1590
      %v1592 = vpop.f32.mrf.mxu0
      %1593 = vmatprep.mubr.f32.mxu0 0.0
      %1594 = vmatmul.mubr.f32.gmra.mxu0 %v1296
      %v1595 = vpop.f32.mrf.mxu0
      %v1596 = vadd.f32 0.0, %v1595
      %v1597 = vpop.f32.mrf.mxu0
      %1598 = vmatprep.mubr.f32.mxu0 0.0
      %1599 = vmatmul.mubr.f32.gmra.mxu0 %v1297
      %v1600 = vpop.f32.mrf.mxu0
      %v1601 = vadd.f32 0.0, %v1600
      %v1602 = vpop.f32.mrf.mxu0
      %1603 = vmatprep.mubr.f32.mxu0 0.0
      %1604 = vmatmul.mubr.f32.gmra.mxu0 %v1298
      %v1605 = vpop.f32.mrf.mxu0
      %v1606 = vadd.f32 0.0, %v1605
      %v1607 = vpop.f32.mrf.mxu0
      %1608 = vmatprep.mubr.f32.mxu0 0.0
      %1609 = vmatmul.mubr.f32.gmra.mxu0 %v1299
      %v1610 = vpop.f32.mrf.mxu0
      %v1611 = vadd.f32 0.0, %v1610
      %v1612 = vpop.f32.mrf.mxu0
      %1613 = vmatprep.mubr.f32.mxu0 0.0
      %1614 = vmatmul.mubr.f32.gmra.mxu0 %v1300
      %v1615 = vpop.f32.mrf.mxu0
      %v1616 = vadd.f32 0.0, %v1615
      %v1617 = vpop.f32.mrf.mxu0
      %1618 = vmatprep.mubr.f32.mxu0 0.0
      %1619 = vmatmul.mubr.f32.gmra.mxu0 %v1301
      %v1620 = vpop.f32.mrf.mxu0
      %v1621 = vadd.f32 0.0, %v1620
      %v1622 = vpop.f32.mrf.mxu0
      %1623 = vmatprep.mubr.f32.mxu0 0.0
      %1624 = vmatmul.mubr.f32.gmra.mxu0 %v1302
      %v1625 = vpop.f32.mrf.mxu0
      %v1626 = vadd.f32 0.0, %v1625
      %v1627 = vpop.f32.mrf.mxu0
      %1628 = vmatprep.mubr.f32.mxu0 0.0
      %1629 = vmatmul.mubr.f32.gmra.mxu0 %v1303
      %v1630 = vpop.f32.mrf.mxu0
      %v1631 = vadd.f32 0.0, %v1630
      %v1632 = vpop.f32.mrf.mxu0
      %1633 = vmatprep.mubr.f32.mxu0 0.0
      %1634 = vmatmul.mubr.f32.gmra.mxu0 %v1304
      %v1635 = vpop.f32.mrf.mxu0
      %v1636 = vadd.f32 0.0, %v1635
      %v1637 = vpop.f32.mrf.mxu0
      %1638 = vmatprep.mubr.f32.mxu0 0.0
      %1639 = vmatmul.mubr.f32.gmra.mxu0 %v1305
      %v1640 = vpop.f32.mrf.mxu0
      %v1641 = vadd.f32 0.0, %v1640
      %v1642 = vpop.f32.mrf.mxu0
      %1643 = vmatprep.mubr.f32.mxu0 0.0
      %1644 = vmatmul.mubr.f32.gmra.mxu0 %v1306
      %v1645 = vpop.f32.mrf.mxu0
      %v1646 = vadd.f32 0.0, %v1645
      %v1647 = vpop.f32.mrf.mxu0
      %1648 = vmatprep.mubr.f32.mxu0 0.0
      %1649 = vmatmul.mubr.f32.gmra.mxu0 %v1307
      %v1650 = vpop.f32.mrf.mxu0
      %v1651 = vadd.f32 0.0, %v1650
      %v1652 = vpop.f32.mrf.mxu0
      %1653 = vmatprep.mubr.f32.mxu0 0.0
      %1654 = vmatmul.mubr.f32.gmra.mxu0 %v1308
      %v1655 = vpop.f32.mrf.mxu0
      %v1656 = vadd.f32 0.0, %v1655
      %v1657 = vpop.f32.mrf.mxu0
      %1658 = vmatprep.mubr.f32.mxu0 0.0
      %1659 = vmatmul.mubr.f32.gmra.mxu0 %v1309
      %v1660 = vpop.f32.mrf.mxu0
      %v1661 = vadd.f32 0.0, %v1660
      %v1662 = vpop.f32.mrf.mxu0
      %1663 = vdwg.mxu0
      %v1664 = vadd.f32 %v1503, %v1586
      %v1665 = vadd.f32 %v1504, %v1591
      %v1666 = vadd.f32 %v1505, %v1596
      %v1667 = vadd.f32 %v1506, %v1601
      %v1668 = vadd.f32 %v1507, %v1606
      %v1669 = vadd.f32 %v1508, %v1611
      %v1670 = vadd.f32 %v1509, %v1616
      %v1671 = vadd.f32 %v1510, %v1621
      %v1672 = vadd.f32 %v1511, %v1626
      %v1673 = vadd.f32 %v1512, %v1631
      %v1674 = vadd.f32 %v1513, %v1636
      %v1675 = vadd.f32 %v1514, %v1641
      %v1676 = vadd.f32 %v1515, %v1646
      %v1677 = vadd.f32 %v1516, %v1651
      %v1678 = vadd.f32 %v1517, %v1656
      %v1679 = vadd.f32 %v1518, %v1661
      %1680 = vst [vmem:[#allocation3] sm:$0xff] %v1664
      %1681 = vst [vmem:[#allocation3 + $0x8] sm:$0xff] %v1665
      %1682 = vst [vmem:[#allocation3 + $0x10] sm:$0xff] %v1666
      %1683 = vst [vmem:[#allocation3 + $0x18] sm:$0xff] %v1667
      %1684 = vst [vmem:[#allocation3 + $0x20] sm:$0xff] %v1668
      %1685 = vst [vmem:[#allocation3 + $0x28] sm:$0xff] %v1669
      %1686 = vst [vmem:[#allocation3 + $0x30] sm:$0xff] %v1670
      %1687 = vst [vmem:[#allocation3 + $0x38] sm:$0xff] %v1671
      %1688 = vst [vmem:[#allocation3 + $0x40] sm:$0xff] %v1672
      %1689 = vst [vmem:[#allocation3 + $0x48] sm:$0xff] %v1673
      %1690 = vst [vmem:[#allocation3 + $0x50] sm:$0xff] %v1674
      %1691 = vst [vmem:[#allocation3 + $0x58] sm:$0xff] %v1675
      %1692 = vst [vmem:[#allocation3 + $0x60] sm:$0xff] %v1676
      %1693 = vst [vmem:[#allocation3 + $0x68] sm:$0xff] %v1677
      %1694 = vst [vmem:[#allocation3 + $0x70] sm:$0xff] %v1678
      %1695 = vst [vmem:[#allocation3 + $0x78] sm:$0xff] %v1679
      // Predicated region
      $region57: #{multi_head_attention.3} parent=51 // pred_check
        %p1696 = pneg %p486
      $region58: #{multi_head_attention.3} parent=51 // pred_check_branch
        %1698 = sbr.rel (%p1696) target = $region60
      $region59: #{multi_head_attention.3} parent=51 // pred_region
        %v1699 = vld [vmem:[#allocation2] sm:$0xff]
        %v1700 = vld [vmem:[#allocation2 + $0x8] sm:$0xff]
        %v1701 = vld [vmem:[#allocation2 + $0x10] sm:$0xff]
        %v1702 = vld [vmem:[#allocation2 + $0x18] sm:$0xff]
        %v1703 = vld [vmem:[#allocation2 + $0x20] sm:$0xff]
        %v1704 = vld [vmem:[#allocation2 + $0x28] sm:$0xff]
        %v1705 = vld [vmem:[#allocation2 + $0x30] sm:$0xff]
        %v1706 = vld [vmem:[#allocation2 + $0x38] sm:$0xff]
        %v1707 = vld [vmem:[#allocation2 + $0x40] sm:$0xff]
        %v1708 = vld [vmem:[#allocation2 + $0x48] sm:$0xff]
        %v1709 = vld [vmem:[#allocation2 + $0x50] sm:$0xff]
        %v1710 = vld [vmem:[#allocation2 + $0x58] sm:$0xff]
        %v1711 = vld [vmem:[#allocation2 + $0x60] sm:$0xff]
        %v1712 = vld [vmem:[#allocation2 + $0x68] sm:$0xff]
        %v1713 = vld [vmem:[#allocation2 + $0x70] sm:$0xff]
        %v1714 = vld [vmem:[#allocation2 + $0x78] sm:$0xff]
        %v1715 = vld [vmem:[#allocation3] sm:$0xff]
        %v1716 = vld [vmem:[#allocation3 + $0x8] sm:$0xff]
        %v1717 = vld [vmem:[#allocation3 + $0x10] sm:$0xff]
        %v1718 = vld [vmem:[#allocation3 + $0x18] sm:$0xff]
        %v1719 = vld [vmem:[#allocation3 + $0x20] sm:$0xff]
        %v1720 = vld [vmem:[#allocation3 + $0x28] sm:$0xff]
        %v1721 = vld [vmem:[#allocation3 + $0x30] sm:$0xff]
        %v1722 = vld [vmem:[#allocation3 + $0x38] sm:$0xff]
        %v1723 = vld [vmem:[#allocation3 + $0x40] sm:$0xff]
        %v1724 = vld [vmem:[#allocation3 + $0x48] sm:$0xff]
        %v1725 = vld [vmem:[#allocation3 + $0x50] sm:$0xff]
        %v1726 = vld [vmem:[#allocation3 + $0x58] sm:$0xff]
        %v1727 = vld [vmem:[#allocation3 + $0x60] sm:$0xff]
        %v1728 = vld [vmem:[#allocation3 + $0x68] sm:$0xff]
        %v1729 = vld [vmem:[#allocation3 + $0x70] sm:$0xff]
        %v1730 = vld [vmem:[#allocation3 + $0x78] sm:$0xff]
        %v1731 = vadd.f32 %v1715, 1e-06
        %v1732 = vadd.f32 %v1716, 1e-06
        %v1733 = vadd.f32 %v1717, 1e-06
        %v1734 = vadd.f32 %v1718, 1e-06
        %v1735 = vadd.f32 %v1719, 1e-06
        %v1736 = vadd.f32 %v1720, 1e-06
        %v1737 = vadd.f32 %v1721, 1e-06
        %v1738 = vadd.f32 %v1722, 1e-06
        %v1739 = vadd.f32 %v1723, 1e-06
        %v1740 = vadd.f32 %v1724, 1e-06
        %v1741 = vadd.f32 %v1725, 1e-06
        %v1742 = vadd.f32 %v1726, 1e-06
        %v1743 = vadd.f32 %v1727, 1e-06
        %v1744 = vadd.f32 %v1728, 1e-06
        %v1745 = vadd.f32 %v1729, 1e-06
        %v1746 = vadd.f32 %v1730, 1e-06
        %v1747 = vrcp.pop %v1731
        %v1748 = vrcp.pop %v1732
        %v1749 = vrcp.pop %v1733
        %v1750 = vrcp.pop %v1734
        %v1751 = vrcp.pop %v1735
        %v1752 = vrcp.pop %v1736
        %v1753 = vrcp.pop %v1737
        %v1754 = vrcp.pop %v1738
        %v1755 = vrcp.pop %v1739
        %v1756 = vrcp.pop %v1740
        %v1757 = vrcp.pop %v1741
        %v1758 = vrcp.pop %v1742
        %v1759 = vrcp.pop %v1743
        %v1760 = vrcp.pop %v1744
        %v1761 = vrcp.pop %v1745
        %v1762 = vrcp.pop %v1746
        %v1763 = vmul.f32 %v1699, %v1747
        %v1764 = vmul.f32 %v1700, %v1748
        %v1765 = vmul.f32 %v1701, %v1749
        %v1766 = vmul.f32 %v1702, %v1750
        %v1767 = vmul.f32 %v1703, %v1751
        %v1768 = vmul.f32 %v1704, %v1752
        %v1769 = vmul.f32 %v1705, %v1753
        %v1770 = vmul.f32 %v1706, %v1754
        %v1771 = vmul.f32 %v1707, %v1755
        %v1772 = vmul.f32 %v1708, %v1756
        %v1773 = vmul.f32 %v1709, %v1757
        %v1774 = vmul.f32 %v1710, %v1758
        %v1775 = vmul.f32 %v1711, %v1759
        %v1776 = vmul.f32 %v1712, %v1760
        %v1777 = vmul.f32 %v1713, %v1761
        %v1778 = vmul.f32 %v1714, %v1762
        %1779 = vst [vmem:[%s469] sm:$0xff] %v1763
        %1780 = vst [vmem:[%s469 + $0x8] sm:$0xff] %v1764
        %1781 = vst [vmem:[%s469 + $0x10] sm:$0xff] %v1765
        %1782 = vst [vmem:[%s469 + $0x18] sm:$0xff] %v1766
        %1783 = vst [vmem:[%s469 + $0x20] sm:$0xff] %v1767
        %1784 = vst [vmem:[%s469 + $0x28] sm:$0xff] %v1768
        %1785 = vst [vmem:[%s469 + $0x30] sm:$0xff] %v1769
        %1786 = vst [vmem:[%s469 + $0x38] sm:$0xff] %v1770
        %1787 = vst [vmem:[%s469 + $0x40] sm:$0xff] %v1771
        %1788 = vst [vmem:[%s469 + $0x48] sm:$0xff] %v1772
        %1789 = vst [vmem:[%s469 + $0x50] sm:$0xff] %v1773
        %1790 = vst [vmem:[%s469 + $0x58] sm:$0xff] %v1774
        %1791 = vst [vmem:[%s469 + $0x60] sm:$0xff] %v1775
        %1792 = vst [vmem:[%s469 + $0x68] sm:$0xff] %v1776
        %1793 = vst [vmem:[%s469 + $0x70] sm:$0xff] %v1777
        %1794 = vst [vmem:[%s469 + $0x78] sm:$0xff] %v1778
      $region60: #{multi_head_attention.3} parent=51 // pred_fallthru
        _
      %s1795 = smul.u32 16, %s28
      %p1796 = scmp.lt.s32.totalorder %s1795, 95
      %s1797 = scalar_select %p1796, %s1795, 95
      %s1798 = smul.addr %s1797, 8
      %s1799 = scalar_lea.vmem %s9, %s1798
      %s1800 = sld [smem:[#allocation5 + %s28]]
      %s1801 = smul.u32 16, %s1800
      %p1802 = scmp.lt.s32.totalorder %s1801, 31
      %s1803 = scalar_select %p1802, %s1801, 31
      %s1804 = smul.addr %s1803, 8
      %s1805 = scalar_lea.vmem %s10, %s1804
      // Predicated region
      $region61: #{multi_head_attention.3} parent=51 // pred_check
        %p1806 = pneg %p244
      $region62: #{multi_head_attention.3} parent=51 // pred_check_branch
        %1808 = sbr.rel (%p1806) target = $region64
      $region63: #{multi_head_attention.3} parent=51 // pred_region
        %s1809 = smul.u32 16, %s28
      $region64: #{multi_head_attention.3} parent=51 // pred_fallthru
        _
      // Predicated region
      $region65: #{multi_head_attention.3} parent=51 // pred_check
        %p1810 = pneg %p272
      $region66: #{multi_head_attention.3} parent=51 // pred_check_branch
        %1812 = sbr.rel (%p1810) target = $region68
      $region67: #{multi_head_attention.3} parent=51 // pred_region
        %s1813 = sld [smem:[#allocation5 + %s28]]
        %s1814 = smul.u32 16, %s1813
      $region68: #{multi_head_attention.3} parent=51 // pred_fallthru
        _
    $region52: #{multi_head_attention.3} parent=5 // pred_fallthru
      _
    %p1815 = scmp.le.s32.totalorder 2, %s23
    // Predicated region
    $region69: #{multi_head_attention.3} parent=5 // pred_check
      %p1816 = pneg %p1815
    $region70: #{multi_head_attention.3} parent=5 // pred_check_branch
      %1818 = sbr.rel (%p1816) target = $region72
    $region71: #{multi_head_attention.3} parent=5 // pred_region
      %s1819 = ssub.s32 %s23, 2
      // Predicated region
      $region73: #{multi_head_attention.3} parent=71 // pred_check
        %p1820 = pneg %p250
      $region74: #{multi_head_attention.3} parent=71 // pred_check_branch
        %1822 = sbr.rel (%p1820) target = $region76
      $region75: #{multi_head_attention.3} parent=71 // pred_region
        %s1823 = smul.u32 16, %s29
        %p1824 = scmp.lt.s32.totalorder %s1823, 95
        %s1825 = scalar_select %p1824, %s1823, 95
        %s1826 = smul.addr %s1825, 8
        %s1827 = scalar_lea.vmem %s9, %s1826
      $region76: #{multi_head_attention.3} parent=71 // pred_fallthru
        _
      // Predicated region
      $region77: #{multi_head_attention.3} parent=71 // pred_check
        %p1828 = pneg %p278
      $region78: #{multi_head_attention.3} parent=71 // pred_check_branch
        %1830 = sbr.rel (%p1828) target = $region80
      $region79: #{multi_head_attention.3} parent=71 // pred_region
        %s1831 = sld [smem:[#allocation5 + %s29]]
        %s1832 = smul.u32 16, %s1831
        %p1833 = scmp.lt.s32.totalorder %s1832, 31
        %s1834 = scalar_select %p1833, %s1832, 31
        %s1835 = smul.addr %s1834, 8
        %s1836 = scalar_lea.vmem %s10, %s1835
      $region80: #{multi_head_attention.3} parent=71 // pred_fallthru
        _
    $region72: #{multi_head_attention.3} parent=5 // pred_fallthru
      _
  $region6: #{multi_head_attention.3} parent=0 // loop_footer
    %s27 = sadd.s32 1, %s23
  $region7: #{multi_head_attention.3} parent=0 // loop_footer_branch
    %22 = sbr.rel target = $region3
  $region8: #{multi_head_attention.3} parent=0 // loop_exit
    _

</llo_original>
